<compile_context>
chip_gen: v7x
topology: tpu7x:2x2x1
jax: 0.10.0
libtpu: 0.0.40
codegen_flags: <defaults>
</compile_context>

<pallas_src>
import functools
import math

import jax
import jax.numpy as jnp
import numpy as np
from jax.experimental import pallas as pl
from jax.experimental.pallas import tpu as pltpu


def _round_up(x, m):
    return ((x + m - 1) // m) * m


def _corr_kernel(x1_ref, x2_ref, out_ref, *, H, W, win, pad, scale, Wout):
    """One (batch, channel-chunk) grid step.

    x1_ref  : (c_chunk, H, W)   feature map 1 chunk (VMEM block)
    x2_ref  : (c_chunk, H, W)   feature map 2 chunk (VMEM block)
    out_ref : (win, H, Wout)    packed output, resident across the chunk axis:
                                out[dy, h, dx*W + w] = corr(dy, dx, h, w)
    """
    c = pl.program_id(1)
    n_c = pl.num_programs(1)

    @pl.when(c == 0)
    def _init():
        out_ref[...] = jnp.zeros_like(out_ref)

    ck = x1_ref.shape[0]
    x1c = x1_ref[...].astype(jnp.float32)                   # (ck, H, W)
    x2c = x2_ref[...].astype(jnp.float32)                   # (ck, H, W)

    lane_pad = Wout - win * W

    # --- x1 replicated `win` times along lanes (value; no scratch round-trip).
    x1_pieces = [x1c] * win
    if lane_pad:
        x1_pieces.append(jnp.zeros((ck, H, lane_pad), jnp.float32))
    x1t = jnp.concatenate(x1_pieces, axis=-1)                # (ck, H, Wout)

    # --- edge-clamped ("replicate") padding of the x2 chunk, built as a value.
    left = jnp.broadcast_to(x2c[:, :, 0:1], (ck, H, pad))
    right = jnp.broadcast_to(x2c[:, :, W - 1:W], (ck, H, pad))
    x2w = jnp.concatenate([left, x2c, right], axis=-1)       # (ck, H, W+2p)
    top = jnp.broadcast_to(x2w[:, 0:1, :], (ck, pad, W + 2 * pad))
    bot = jnp.broadcast_to(x2w[:, H - 1:H, :], (ck, pad, W + 2 * pad))
    x2p = jnp.concatenate([top, x2w, bot], axis=-2)          # (ck, H+2p, W+2p)

    # --- pack all `win` horizontal (lane) shifts side by side, once per chunk.
    pk_pieces = [x2p[:, :, j:j + W] for j in range(win)]
    if lane_pad:
        pk_pieces.append(jnp.zeros((ck, H + 2 * pad, lane_pad), jnp.float32))
    pack = jnp.concatenate(pk_pieces, axis=-1)               # (ck, H+2p, Wout)

    # --- the `win` vertical shifts are sublane-offset slices of the packed
    #     slab; multiply / channel-reduce / store are lane-dense (Wout wide).
    for dy in range(win):                                    # static unroll (9)
        prod = x1t * pack[:, dy:dy + H, :]
        out_ref[dy, :, :] = out_ref[dy, :, :] + jnp.sum(prod, axis=0)

    @pl.when(c == n_c - 1)
    def _finalize():
        out_ref[...] = out_ref[...] * jnp.float32(scale)


def efficient_correlation(x1, x2, max_displacement=4, chunk_size=4, c_chunk=4):
    """JAX/Pallas equivalent of the PyTorch EfficientCorrelation.forward (NCHW)."""
    assert x1.shape == x2.shape, "x1 and x2 must have the same shape"
    B, C, H, W = x2.shape
    pad = max_displacement
    win = 2 * pad + 1
    n_chunks = math.ceil(C / chunk_size)
    scale = 1.0 / n_chunks            # chunked sum-then-mean == full sum / n_chunks

    # Stream channels through the grid in c_chunk-sized slices; pad C with zeros
    # to a multiple (zero channels contribute nothing to the sums).
    c_chunk = max(1, min(c_chunk, C))
    Cp = _round_up(C, c_chunk)
    if Cp != C:
        zpad = ((0, 0), (0, Cp - C), (0, 0), (0, 0))
        x1 = jnp.pad(x1, zpad)
        x2 = jnp.pad(x2, zpad)
    n_cchunks = Cp // c_chunk

    Wout = _round_up(win * W, 128)    # lane-dense packed output width

    kernel = functools.partial(_corr_kernel, H=H, W=W, win=win, pad=pad,
                               scale=scale, Wout=Wout)

    # --- VMEM budget from (8,128)-tile-padded block sizes, generation-aware cap.
    def tile_bytes(shape, dtype):
        it = jnp.dtype(dtype).itemsize
        sub = 8 * max(1, 4 // it)     # sub-32-bit dtypes pack along sublanes
        d = list(shape)
        d[-1] = _round_up(d[-1], 128)
        d[-2] = _round_up(d[-2], sub)
        n = 1
        for v in d:
            n *= v
        return n * it

    in_bytes = 2 * 2 * tile_bytes((c_chunk, H, W), x1.dtype)   # 2 inputs, 2 bufs
    out_bytes = 2 * tile_bytes((win, H, Wout), jnp.float32)
    slab_bytes = (tile_bytes((c_chunk, H, Wout), jnp.float32)             # x1t
                  + tile_bytes((c_chunk, H + 2 * pad, Wout), jnp.float32)  # pack
                  + tile_bytes((c_chunk, H + 2 * pad, W + 2 * pad), jnp.float32))
    needed = in_bytes + out_bytes + slab_bytes + (4 << 20)
    try:
        cap = pltpu.get_tpu_info().vmem_capacity_bytes - (8 << 20)
    except Exception:                 # conservative fallback, safe on v7x (64 MiB)
        cap = 56 * 1024 * 1024
    vmem_limit = int(min(max(needed, 32 * 1024 * 1024), cap))

    out_packed = pl.pallas_call(
        kernel,
        out_shape=jax.ShapeDtypeStruct((B, win, H, Wout), jnp.float32),
        grid_spec=pltpu.PrefetchScalarGridSpec(
            num_scalar_prefetch=0,
            grid=(B, n_cchunks),                  # channel (reduction) axis last
            in_specs=[
                pl.BlockSpec((None, c_chunk, H, W), lambda b, c: (b, c, 0, 0)),
                pl.BlockSpec((None, c_chunk, H, W), lambda b, c: (b, c, 0, 0)),
            ],
            out_specs=pl.BlockSpec((None, win, H, Wout),
                                   lambda b, c: (b, 0, 0, 0)),   # resident over c
        ),
        compiler_params=pltpu.CompilerParams(
            dimension_semantics=("parallel", "arbitrary"),
            vmem_limit_bytes=vmem_limit,
        ),
    )(x1, x2)

    # Packed (B, dy, H, dx*W + w)  ->  PyTorch (B, dy*win + dx, H, W).
    # TODO(synk): downstream consumers that accept the packed layout can skip
    # this HBM round-trip entirely (it re-reads/writes the full volume).
    out = out_packed[..., :win * W].reshape(B, win, H, win, W)
    out = jnp.transpose(out, (0, 1, 3, 2, 4))
    return out.reshape(B, win * win, H, W)


def reference(x1, x2, max_displacement=4, chunk_size=4):
    """Pure-JAX transcription of the PyTorch forward (chunked sum + mean)."""
    B, C, H, W = x2.shape
    pad = max_displacement
    x2p = jnp.pad(x2, ((0, 0), (0, 0), (pad, pad), (pad, pad)), mode="edge")
    chunk_corrs = []
    for i in range(0, C, chunk_size):
        end = min(i + chunk_size, C)
        x1c = x1[:, i:end]
        x2pc = x2p[:, i:end]
        maps = []
        for dy in range(-pad, pad + 1):
            for dx in range(-pad, pad + 1):
                x2s = x2pc[:, :, pad + dy:pad + dy + H, pad + dx:pad + dx + W]
                maps.append(jnp.sum(x1c * x2s, axis=1))
        chunk_corrs.append(jnp.stack(maps, axis=1))
    return jnp.mean(jnp.stack(chunk_corrs, axis=0), axis=0)


if __name__ == "__main__":
    key = jax.random.PRNGKey(0)
    k1, k2 = jax.random.split(key)
    B, C, H, W = 2, 8, 16, 16          # C=8 -> 2 normalization chunks of 4
    md = 4                             # window_size = 9, out channels = 81
    x1 = jax.random.normal(k1, (B, C, H, W), dtype=jnp.float32)
    x2 = jax.random.normal(k2, (B, C, H, W), dtype=jnp.float32)

    out = efficient_correlation(x1, x2, max_displacement=md)
    jax.block_until_ready(out)

    ref = reference(x1, x2, max_displacement=md)
    assert out.shape == (B, (2 * md + 1) ** 2, H, W)
    assert out.dtype == jnp.float32
    np.testing.assert_allclose(np.asarray(out), np.asarray(ref),
                               rtol=1e-5, atol=1e-5)
    print("KERNEL_OK")
</pallas_src>

<mosaic_0001>
module attributes {stable_mosaic.version = 11 : i64} {
  func.func @_corr_kernel(%arg0: i32, %arg1: i32, %arg2: memref<1x4x16x16xf32, #tpu.memory_space<vmem>>, %arg3: memref<1x4x16x16xf32, #tpu.memory_space<vmem>>, %arg4: memref<1x9x16x256xf32, #tpu.memory_space<vmem>>) attributes {dimension_semantics = [#tpu.dimension_semantics<parallel>, #tpu.dimension_semantics<arbitrary>], iteration_bounds = array<i64: 2, 2>, scalar_prefetch = 0 : i64, scratch_operands = 0 : i64, tpu.core_type = #tpu.core_type<tc>, window_params = [{transform_indices = @transform_0, window_bounds = array<i64: 1, 4, 16, 16>}, {transform_indices = @transform_1, window_bounds = array<i64: 1, 4, 16, 16>}, {transform_indices = @transform_2, window_bounds = array<i64: 1, 9, 16, 256>}]} {
    %c0_i32 = arith.constant 0 : i32
    %0 = arith.cmpi eq, %arg1, %c0_i32 : i32
    %1 = arith.extui %0 : i1 to i32
    %c0_i32_0 = arith.constant 0 : i32
    %2 = arith.cmpi ne, %1, %c0_i32_0 : i32
    scf.if %2 {
      %cst_83 = arith.constant 0.000000e+00 : f32
      %118 = vector.broadcast %cst_83 : f32 to vector<9x16x256xf32>
      %c0_84 = arith.constant 0 : index
      %c0_85 = arith.constant 0 : index
      %c0_86 = arith.constant 0 : index
      %c0_87 = arith.constant 0 : index
      %119 = vector.load %arg4[%c0_84, %c0_85, %c0_86, %c0_87] : memref<1x9x16x256xf32, #tpu.memory_space<vmem>>, vector<1x9x16x256xf32>
      %120 = vector.shape_cast %119 : vector<1x9x16x256xf32> to vector<9x16x256xf32>
      %121 = vector.shape_cast %118 : vector<9x16x256xf32> to vector<1x9x16x256xf32>
      tpu.vector_store %arg4[%c0_84, %c0_85, %c0_86, %c0_87], %121 {strides = array<i32>} : memref<1x9x16x256xf32, #tpu.memory_space<vmem>>, vector<1x9x16x256xf32>,
    } else {
    }
    %c0 = arith.constant 0 : index
    %c0_1 = arith.constant 0 : index
    %c0_2 = arith.constant 0 : index
    %c0_3 = arith.constant 0 : index
    %3 = vector.load %arg2[%c0, %c0_1, %c0_2, %c0_3] : memref<1x4x16x16xf32, #tpu.memory_space<vmem>>, vector<1x4x16x16xf32>
    %4 = vector.shape_cast %3 : vector<1x4x16x16xf32> to vector<4x16x16xf32>
    %c0_4 = arith.constant 0 : index
    %c0_5 = arith.constant 0 : index
    %c0_6 = arith.constant 0 : index
    %c0_7 = arith.constant 0 : index
    %5 = vector.load %arg3[%c0_4, %c0_5, %c0_6, %c0_7] : memref<1x4x16x16xf32, #tpu.memory_space<vmem>>, vector<1x4x16x16xf32>
    %6 = vector.shape_cast %5 : vector<1x4x16x16xf32> to vector<4x16x16xf32>
    %cst = arith.constant 0.000000e+00 : f32
    %7 = vector.broadcast %cst : f32 to vector<4x16x112xf32>
    %8 = tpu.concatenate %4, %4, %4, %4, %4, %4, %4, %4, %4, %7 in 2 : vector<4x16x16xf32>, vector<4x16x16xf32>, vector<4x16x16xf32>, vector<4x16x16xf32>, vector<4x16x16xf32>, vector<4x16x16xf32>, vector<4x16x16xf32>, vector<4x16x16xf32>, vector<4x16x16xf32>, vector<4x16x112xf32> -> vector<4x16x256xf32>
    %9 = vector.extract_strided_slice %6 {offsets = [0, 0, 0], sizes = [4, 16, 1], strides = [1, 1, 1]} : vector<4x16x16xf32> to vector<4x16x1xf32>
    %10 = vector.shape_cast %9 : vector<4x16x1xf32> to vector<4x16x1xf32>
    %11 = vector.broadcast %10 : vector<4x16x1xf32> to vector<4x16x4xf32>
    %12 = vector.extract_strided_slice %6 {offsets = [0, 0, 15], sizes = [4, 16, 1], strides = [1, 1, 1]} : vector<4x16x16xf32> to vector<4x16x1xf32>
    %13 = vector.shape_cast %12 : vector<4x16x1xf32> to vector<4x16x1xf32>
    %14 = vector.broadcast %13 : vector<4x16x1xf32> to vector<4x16x4xf32>
    %15 = tpu.concatenate %11, %6, %14 in 2 : vector<4x16x4xf32>, vector<4x16x16xf32>, vector<4x16x4xf32> -> vector<4x16x24xf32>
    %16 = vector.extract_strided_slice %15 {offsets = [0, 0, 0], sizes = [4, 1, 24], strides = [1, 1, 1]} : vector<4x16x24xf32> to vector<4x1x24xf32>
    %17 = vector.shape_cast %16 : vector<4x1x24xf32> to vector<4x1x24xf32>
    %18 = vector.broadcast %17 : vector<4x1x24xf32> to vector<4x4x24xf32>
    %19 = vector.extract_strided_slice %15 {offsets = [0, 15, 0], sizes = [4, 1, 24], strides = [1, 1, 1]} : vector<4x16x24xf32> to vector<4x1x24xf32>
    %20 = vector.shape_cast %19 : vector<4x1x24xf32> to vector<4x1x24xf32>
    %21 = vector.broadcast %20 : vector<4x1x24xf32> to vector<4x4x24xf32>
    %22 = tpu.concatenate %18, %15, %21 in 1 : vector<4x4x24xf32>, vector<4x16x24xf32>, vector<4x4x24xf32> -> vector<4x24x24xf32>
    %23 = vector.extract_strided_slice %22 {offsets = [0, 0, 0], sizes = [4, 24, 16], strides = [1, 1, 1]} : vector<4x24x24xf32> to vector<4x24x16xf32>
    %24 = vector.extract_strided_slice %22 {offsets = [0, 0, 1], sizes = [4, 24, 16], strides = [1, 1, 1]} : vector<4x24x24xf32> to vector<4x24x16xf32>
    %25 = vector.extract_strided_slice %22 {offsets = [0, 0, 2], sizes = [4, 24, 16], strides = [1, 1, 1]} : vector<4x24x24xf32> to vector<4x24x16xf32>
    %26 = vector.extract_strided_slice %22 {offsets = [0, 0, 3], sizes = [4, 24, 16], strides = [1, 1, 1]} : vector<4x24x24xf32> to vector<4x24x16xf32>
    %27 = vector.extract_strided_slice %22 {offsets = [0, 0, 4], sizes = [4, 24, 16], strides = [1, 1, 1]} : vector<4x24x24xf32> to vector<4x24x16xf32>
    %28 = vector.extract_strided_slice %22 {offsets = [0, 0, 5], sizes = [4, 24, 16], strides = [1, 1, 1]} : vector<4x24x24xf32> to vector<4x24x16xf32>
    %29 = vector.extract_strided_slice %22 {offsets = [0, 0, 6], sizes = [4, 24, 16], strides = [1, 1, 1]} : vector<4x24x24xf32> to vector<4x24x16xf32>
    %30 = vector.extract_strided_slice %22 {offsets = [0, 0, 7], sizes = [4, 24, 16], strides = [1, 1, 1]} : vector<4x24x24xf32> to vector<4x24x16xf32>
    %31 = vector.extract_strided_slice %22 {offsets = [0, 0, 8], sizes = [4, 24, 16], strides = [1, 1, 1]} : vector<4x24x24xf32> to vector<4x24x16xf32>
    %cst_8 = arith.constant 0.000000e+00 : f32
    %32 = vector.broadcast %cst_8 : f32 to vector<4x24x112xf32>
    %33 = tpu.concatenate %23, %24, %25, %26, %27, %28, %29, %30, %31, %32 in 2 : vector<4x24x16xf32>, vector<4x24x16xf32>, vector<4x24x16xf32>, vector<4x24x16xf32>, vector<4x24x16xf32>, vector<4x24x16xf32>, vector<4x24x16xf32>, vector<4x24x16xf32>, vector<4x24x16xf32>, vector<4x24x112xf32> -> vector<4x24x256xf32>
    %34 = vector.extract_strided_slice %33 {offsets = [0, 0, 0], sizes = [4, 16, 256], strides = [1, 1, 1]} : vector<4x24x256xf32> to vector<4x16x256xf32>
    %35 = arith.mulf %8, %34 : vector<4x16x256xf32>
    %c0_9 = arith.constant 0 : index
    %c0_10 = arith.constant 0 : index
    %c0_11 = arith.constant 0 : index
    %c0_12 = arith.constant 0 : index
    %36 = vector.load %arg4[%c0_9, %c0_10, %c0_11, %c0_12] : memref<1x9x16x256xf32, #tpu.memory_space<vmem>>, vector<1x1x16x256xf32>
    %37 = vector.shape_cast %36 : vector<1x1x16x256xf32> to vector<16x256xf32>
    %cst_13 = arith.constant dense<0.000000e+00> : vector<16x256xf32>
    %38 = vector.multi_reduction <add>, %35, %cst_13 [0] : vector<4x16x256xf32> to vector<16x256xf32>
    %39 = arith.addf %37, %38 : vector<16x256xf32>
    %c0_14 = arith.constant 0 : index
    %c0_15 = arith.constant 0 : index
    %c0_16 = arith.constant 0 : index
    %c0_17 = arith.constant 0 : index
    %40 = vector.load %arg4[%c0_14, %c0_15, %c0_16, %c0_17] : memref<1x9x16x256xf32, #tpu.memory_space<vmem>>, vector<1x1x16x256xf32>
    %41 = vector.shape_cast %40 : vector<1x1x16x256xf32> to vector<16x256xf32>
    %42 = vector.shape_cast %39 : vector<16x256xf32> to vector<1x1x16x256xf32>
    tpu.vector_store %arg4[%c0_14, %c0_15, %c0_16, %c0_17], %42 {strides = array<i32>} : memref<1x9x16x256xf32, #tpu.memory_space<vmem>>, vector<1x1x16x256xf32>,
    %43 = vector.extract_strided_slice %33 {offsets = [0, 1, 0], sizes = [4, 16, 256], strides = [1, 1, 1]} : vector<4x24x256xf32> to vector<4x16x256xf32>
    %44 = arith.mulf %8, %43 : vector<4x16x256xf32>
    %c0_18 = arith.constant 0 : index
    %c1 = arith.constant 1 : index
    %c0_19 = arith.constant 0 : index
    %c0_20 = arith.constant 0 : index
    %45 = vector.load %arg4[%c0_18, %c1, %c0_19, %c0_20] : memref<1x9x16x256xf32, #tpu.memory_space<vmem>>, vector<1x1x16x256xf32>
    %46 = vector.shape_cast %45 : vector<1x1x16x256xf32> to vector<16x256xf32>
    %cst_21 = arith.constant dense<0.000000e+00> : vector<16x256xf32>
    %47 = vector.multi_reduction <add>, %44, %cst_21 [0] : vector<4x16x256xf32> to vector<16x256xf32>
    %48 = arith.addf %46, %47 : vector<16x256xf32>
    %c0_22 = arith.constant 0 : index
    %c1_23 = arith.constant 1 : index
    %c0_24 = arith.constant 0 : index
    %c0_25 = arith.constant 0 : index
    %49 = vector.load %arg4[%c0_22, %c1_23, %c0_24, %c0_25] : memref<1x9x16x256xf32, #tpu.memory_space<vmem>>, vector<1x1x16x256xf32>
    %50 = vector.shape_cast %49 : vector<1x1x16x256xf32> to vector<16x256xf32>
    %51 = vector.shape_cast %48 : vector<16x256xf32> to vector<1x1x16x256xf32>
    tpu.vector_store %arg4[%c0_22, %c1_23, %c0_24, %c0_25], %51 {strides = array<i32>} : memref<1x9x16x256xf32, #tpu.memory_space<vmem>>, vector<1x1x16x256xf32>,
    %52 = vector.extract_strided_slice %33 {offsets = [0, 2, 0], sizes = [4, 16, 256], strides = [1, 1, 1]} : vector<4x24x256xf32> to vector<4x16x256xf32>
    %53 = arith.mulf %8, %52 : vector<4x16x256xf32>
    %c0_26 = arith.constant 0 : index
    %c2 = arith.constant 2 : index
    %c0_27 = arith.constant 0 : index
    %c0_28 = arith.constant 0 : index
    %54 = vector.load %arg4[%c0_26, %c2, %c0_27, %c0_28] : memref<1x9x16x256xf32, #tpu.memory_space<vmem>>, vector<1x1x16x256xf32>
    %55 = vector.shape_cast %54 : vector<1x1x16x256xf32> to vector<16x256xf32>
    %cst_29 = arith.constant dense<0.000000e+00> : vector<16x256xf32>
    %56 = vector.multi_reduction <add>, %53, %cst_29 [0] : vector<4x16x256xf32> to vector<16x256xf32>
    %57 = arith.addf %55, %56 : vector<16x256xf32>
    %c0_30 = arith.constant 0 : index
    %c2_31 = arith.constant 2 : index
    %c0_32 = arith.constant 0 : index
    %c0_33 = arith.constant 0 : index
    %58 = vector.load %arg4[%c0_30, %c2_31, %c0_32, %c0_33] : memref<1x9x16x256xf32, #tpu.memory_space<vmem>>, vector<1x1x16x256xf32>
    %59 = vector.shape_cast %58 : vector<1x1x16x256xf32> to vector<16x256xf32>
    %60 = vector.shape_cast %57 : vector<16x256xf32> to vector<1x1x16x256xf32>
    tpu.vector_store %arg4[%c0_30, %c2_31, %c0_32, %c0_33], %60 {strides = array<i32>} : memref<1x9x16x256xf32, #tpu.memory_space<vmem>>, vector<1x1x16x256xf32>,
    %61 = vector.extract_strided_slice %33 {offsets = [0, 3, 0], sizes = [4, 16, 256], strides = [1, 1, 1]} : vector<4x24x256xf32> to vector<4x16x256xf32>
    %62 = arith.mulf %8, %61 : vector<4x16x256xf32>
    %c0_34 = arith.constant 0 : index
    %c3 = arith.constant 3 : index
    %c0_35 = arith.constant 0 : index
    %c0_36 = arith.constant 0 : index
    %63 = vector.load %arg4[%c0_34, %c3, %c0_35, %c0_36] : memref<1x9x16x256xf32, #tpu.memory_space<vmem>>, vector<1x1x16x256xf32>
    %64 = vector.shape_cast %63 : vector<1x1x16x256xf32> to vector<16x256xf32>
    %cst_37 = arith.constant dense<0.000000e+00> : vector<16x256xf32>
    %65 = vector.multi_reduction <add>, %62, %cst_37 [0] : vector<4x16x256xf32> to vector<16x256xf32>
    %66 = arith.addf %64, %65 : vector<16x256xf32>
    %c0_38 = arith.constant 0 : index
    %c3_39 = arith.constant 3 : index
    %c0_40 = arith.constant 0 : index
    %c0_41 = arith.constant 0 : index
    %67 = vector.load %arg4[%c0_38, %c3_39, %c0_40, %c0_41] : memref<1x9x16x256xf32, #tpu.memory_space<vmem>>, vector<1x1x16x256xf32>
    %68 = vector.shape_cast %67 : vector<1x1x16x256xf32> to vector<16x256xf32>
    %69 = vector.shape_cast %66 : vector<16x256xf32> to vector<1x1x16x256xf32>
    tpu.vector_store %arg4[%c0_38, %c3_39, %c0_40, %c0_41], %69 {strides = array<i32>} : memref<1x9x16x256xf32, #tpu.memory_space<vmem>>, vector<1x1x16x256xf32>,
    %70 = vector.extract_strided_slice %33 {offsets = [0, 4, 0], sizes = [4, 16, 256], strides = [1, 1, 1]} : vector<4x24x256xf32> to vector<4x16x256xf32>
    %71 = arith.mulf %8, %70 : vector<4x16x256xf32>
    %c0_42 = arith.constant 0 : index
    %c4 = arith.constant 4 : index
    %c0_43 = arith.constant 0 : index
    %c0_44 = arith.constant 0 : index
    %72 = vector.load %arg4[%c0_42, %c4, %c0_43, %c0_44] : memref<1x9x16x256xf32, #tpu.memory_space<vmem>>, vector<1x1x16x256xf32>
    %73 = vector.shape_cast %72 : vector<1x1x16x256xf32> to vector<16x256xf32>
    %cst_45 = arith.constant dense<0.000000e+00> : vector<16x256xf32>
    %74 = vector.multi_reduction <add>, %71, %cst_45 [0] : vector<4x16x256xf32> to vector<16x256xf32>
    %75 = arith.addf %73, %74 : vector<16x256xf32>
    %c0_46 = arith.constant 0 : index
    %c4_47 = arith.constant 4 : index
    %c0_48 = arith.constant 0 : index
    %c0_49 = arith.constant 0 : index
    %76 = vector.load %arg4[%c0_46, %c4_47, %c0_48, %c0_49] : memref<1x9x16x256xf32, #tpu.memory_space<vmem>>, vector<1x1x16x256xf32>
    %77 = vector.shape_cast %76 : vector<1x1x16x256xf32> to vector<16x256xf32>
    %78 = vector.shape_cast %75 : vector<16x256xf32> to vector<1x1x16x256xf32>
    tpu.vector_store %arg4[%c0_46, %c4_47, %c0_48, %c0_49], %78 {strides = array<i32>} : memref<1x9x16x256xf32, #tpu.memory_space<vmem>>, vector<1x1x16x256xf32>,
    %79 = vector.extract_strided_slice %33 {offsets = [0, 5, 0], sizes = [4, 16, 256], strides = [1, 1, 1]} : vector<4x24x256xf32> to vector<4x16x256xf32>
    %80 = arith.mulf %8, %79 : vector<4x16x256xf32>
    %c0_50 = arith.constant 0 : index
    %c5 = arith.constant 5 : index
    %c0_51 = arith.constant 0 : index
    %c0_52 = arith.constant 0 : index
    %81 = vector.load %arg4[%c0_50, %c5, %c0_51, %c0_52] : memref<1x9x16x256xf32, #tpu.memory_space<vmem>>, vector<1x1x16x256xf32>
    %82 = vector.shape_cast %81 : vector<1x1x16x256xf32> to vector<16x256xf32>
    %cst_53 = arith.constant dense<0.000000e+00> : vector<16x256xf32>
    %83 = vector.multi_reduction <add>, %80, %cst_53 [0] : vector<4x16x256xf32> to vector<16x256xf32>
    %84 = arith.addf %82, %83 : vector<16x256xf32>
    %c0_54 = arith.constant 0 : index
    %c5_55 = arith.constant 5 : index
    %c0_56 = arith.constant 0 : index
    %c0_57 = arith.constant 0 : index
    %85 = vector.load %arg4[%c0_54, %c5_55, %c0_56, %c0_57] : memref<1x9x16x256xf32, #tpu.memory_space<vmem>>, vector<1x1x16x256xf32>
    %86 = vector.shape_cast %85 : vector<1x1x16x256xf32> to vector<16x256xf32>
    %87 = vector.shape_cast %84 : vector<16x256xf32> to vector<1x1x16x256xf32>
    tpu.vector_store %arg4[%c0_54, %c5_55, %c0_56, %c0_57], %87 {strides = array<i32>} : memref<1x9x16x256xf32, #tpu.memory_space<vmem>>, vector<1x1x16x256xf32>,
    %88 = vector.extract_strided_slice %33 {offsets = [0, 6, 0], sizes = [4, 16, 256], strides = [1, 1, 1]} : vector<4x24x256xf32> to vector<4x16x256xf32>
    %89 = arith.mulf %8, %88 : vector<4x16x256xf32>
    %c0_58 = arith.constant 0 : index
    %c6 = arith.constant 6 : index
    %c0_59 = arith.constant 0 : index
    %c0_60 = arith.constant 0 : index
    %90 = vector.load %arg4[%c0_58, %c6, %c0_59, %c0_60] : memref<1x9x16x256xf32, #tpu.memory_space<vmem>>, vector<1x1x16x256xf32>
    %91 = vector.shape_cast %90 : vector<1x1x16x256xf32> to vector<16x256xf32>
    %cst_61 = arith.constant dense<0.000000e+00> : vector<16x256xf32>
    %92 = vector.multi_reduction <add>, %89, %cst_61 [0] : vector<4x16x256xf32> to vector<16x256xf32>
    %93 = arith.addf %91, %92 : vector<16x256xf32>
    %c0_62 = arith.constant 0 : index
    %c6_63 = arith.constant 6 : index
    %c0_64 = arith.constant 0 : index
    %c0_65 = arith.constant 0 : index
    %94 = vector.load %arg4[%c0_62, %c6_63, %c0_64, %c0_65] : memref<1x9x16x256xf32, #tpu.memory_space<vmem>>, vector<1x1x16x256xf32>
    %95 = vector.shape_cast %94 : vector<1x1x16x256xf32> to vector<16x256xf32>
    %96 = vector.shape_cast %93 : vector<16x256xf32> to vector<1x1x16x256xf32>
    tpu.vector_store %arg4[%c0_62, %c6_63, %c0_64, %c0_65], %96 {strides = array<i32>} : memref<1x9x16x256xf32, #tpu.memory_space<vmem>>, vector<1x1x16x256xf32>,
    %97 = vector.extract_strided_slice %33 {offsets = [0, 7, 0], sizes = [4, 16, 256], strides = [1, 1, 1]} : vector<4x24x256xf32> to vector<4x16x256xf32>
    %98 = arith.mulf %8, %97 : vector<4x16x256xf32>
    %c0_66 = arith.constant 0 : index
    %c7 = arith.constant 7 : index
    %c0_67 = arith.constant 0 : index
    %c0_68 = arith.constant 0 : index
    %99 = vector.load %arg4[%c0_66, %c7, %c0_67, %c0_68] : memref<1x9x16x256xf32, #tpu.memory_space<vmem>>, vector<1x1x16x256xf32>
    %100 = vector.shape_cast %99 : vector<1x1x16x256xf32> to vector<16x256xf32>
    %cst_69 = arith.constant dense<0.000000e+00> : vector<16x256xf32>
    %101 = vector.multi_reduction <add>, %98, %cst_69 [0] : vector<4x16x256xf32> to vector<16x256xf32>
    %102 = arith.addf %100, %101 : vector<16x256xf32>
    %c0_70 = arith.constant 0 : index
    %c7_71 = arith.constant 7 : index
    %c0_72 = arith.constant 0 : index
    %c0_73 = arith.constant 0 : index
    %103 = vector.load %arg4[%c0_70, %c7_71, %c0_72, %c0_73] : memref<1x9x16x256xf32, #tpu.memory_space<vmem>>, vector<1x1x16x256xf32>
    %104 = vector.shape_cast %103 : vector<1x1x16x256xf32> to vector<16x256xf32>
    %105 = vector.shape_cast %102 : vector<16x256xf32> to vector<1x1x16x256xf32>
    tpu.vector_store %arg4[%c0_70, %c7_71, %c0_72, %c0_73], %105 {strides = array<i32>} : memref<1x9x16x256xf32, #tpu.memory_space<vmem>>, vector<1x1x16x256xf32>,
    %106 = vector.extract_strided_slice %33 {offsets = [0, 8, 0], sizes = [4, 16, 256], strides = [1, 1, 1]} : vector<4x24x256xf32> to vector<4x16x256xf32>
    %107 = arith.mulf %8, %106 : vector<4x16x256xf32>
    %c0_74 = arith.constant 0 : index
    %c8 = arith.constant 8 : index
    %c0_75 = arith.constant 0 : index
    %c0_76 = arith.constant 0 : index
    %108 = vector.load %arg4[%c0_74, %c8, %c0_75, %c0_76] : memref<1x9x16x256xf32, #tpu.memory_space<vmem>>, vector<1x1x16x256xf32>
    %109 = vector.shape_cast %108 : vector<1x1x16x256xf32> to vector<16x256xf32>
    %cst_77 = arith.constant dense<0.000000e+00> : vector<16x256xf32>
    %110 = vector.multi_reduction <add>, %107, %cst_77 [0] : vector<4x16x256xf32> to vector<16x256xf32>
    %111 = arith.addf %109, %110 : vector<16x256xf32>
    %c0_78 = arith.constant 0 : index
    %c8_79 = arith.constant 8 : index
    %c0_80 = arith.constant 0 : index
    %c0_81 = arith.constant 0 : index
    %112 = vector.load %arg4[%c0_78, %c8_79, %c0_80, %c0_81] : memref<1x9x16x256xf32, #tpu.memory_space<vmem>>, vector<1x1x16x256xf32>
    %113 = vector.shape_cast %112 : vector<1x1x16x256xf32> to vector<16x256xf32>
    %114 = vector.shape_cast %111 : vector<16x256xf32> to vector<1x1x16x256xf32>
    tpu.vector_store %arg4[%c0_78, %c8_79, %c0_80, %c0_81], %114 {strides = array<i32>} : memref<1x9x16x256xf32, #tpu.memory_space<vmem>>, vector<1x1x16x256xf32>,
    %c1_i32 = arith.constant 1 : i32
    %115 = arith.cmpi eq, %arg1, %c1_i32 : i32
    %116 = arith.extui %115 : i1 to i32
    %c0_i32_82 = arith.constant 0 : i32
    %117 = arith.cmpi ne, %116, %c0_i32_82 : i32
    scf.if %117 {
      %c0_83 = arith.constant 0 : index
      %c0_84 = arith.constant 0 : index
      %c0_85 = arith.constant 0 : index
      %c0_86 = arith.constant 0 : index
      %118 = vector.load %arg4[%c0_83, %c0_84, %c0_85, %c0_86] : memref<1x9x16x256xf32, #tpu.memory_space<vmem>>, vector<1x9x16x256xf32>
      %119 = vector.shape_cast %118 : vector<1x9x16x256xf32> to vector<9x16x256xf32>
      %cst_87 = arith.constant 5.000000e-01 : f32
      %120 = vector.broadcast %cst_87 : f32 to vector<9x16x256xf32>
      %121 = arith.mulf %119, %120 : vector<9x16x256xf32>
      %c0_88 = arith.constant 0 : index
      %c0_89 = arith.constant 0 : index
      %c0_90 = arith.constant 0 : index
      %c0_91 = arith.constant 0 : index
      %122 = vector.load %arg4[%c0_88, %c0_89, %c0_90, %c0_91] : memref<1x9x16x256xf32, #tpu.memory_space<vmem>>, vector<1x9x16x256xf32>
      %123 = vector.shape_cast %122 : vector<1x9x16x256xf32> to vector<9x16x256xf32>
      %124 = vector.shape_cast %121 : vector<9x16x256xf32> to vector<1x9x16x256xf32>
      tpu.vector_store %arg4[%c0_88, %c0_89, %c0_90, %c0_91], %124 {strides = array<i32>} : memref<1x9x16x256xf32, #tpu.memory_space<vmem>>, vector<1x9x16x256xf32>,
    } else {
    }
    return
  }
  func.func @transform_0(%arg0: i32, %arg1: i32) -> (i32, i32, i32, i32) {
    %c0_i32 = arith.constant 0 : i32
    %c0_i32_0 = arith.constant 0 : i32
    %c0_i32_1 = arith.constant 0 : i32
    return %arg0, %arg1, %c0_i32, %c0_i32_0 : i32, i32, i32, i32
  }
  func.func @transform_1(%arg0: i32, %arg1: i32) -> (i32, i32, i32, i32) {
    %c0_i32 = arith.constant 0 : i32
    %c0_i32_0 = arith.constant 0 : i32
    %c0_i32_1 = arith.constant 0 : i32
    return %arg0, %arg1, %c0_i32, %c0_i32_0 : i32, i32, i32, i32
  }
  func.func @transform_2(%arg0: i32, %arg1: i32) -> (i32, i32, i32, i32) {
    %c0_i32 = arith.constant 0 : i32
    %c0_i32_0 = arith.constant 0 : i32
    %c0_i32_1 = arith.constant 0 : i32
    %c0_i32_2 = arith.constant 0 : i32
    return %arg0, %c0_i32, %c0_i32_0, %c0_i32_1 : i32, i32, i32, i32
  }
}

</mosaic_0001>

<llo_original>
// kernel: tpu_custom_call.1
$region0: #{tpu_custom_call.1}
  #allocation0 [shape = 'u32[]', space=smem, size = 0x4, offset = 0x4, fixed_abs, tag = 'smem constant byte address 0x4 - core index']
  #allocation1 [shape = 'u32[144,128]{1,0:T(1,128)}', space=vmem, size = 0x12000, scoped, tag = 'internal scratch']
  %s0 = inlined_call_operand.hbm [shape: f32[2,8,16,16], index: 0, kind: input, shape index: {}]
  %s1 = inlined_call_operand.hbm [shape: f32[2,8,16,16], index: 1, kind: input, shape index: {}]
  %s2 = inlined_call_operand.hbm [shape: f32[2,9,16,256], index: 2, kind: output, shape index: {}]
  %s3 = sld [smem:[#allocation0]]
  $region57: #{tpu_custom_call.1} parent=0
    _
  %s5 = ssub.s32 1, %s3
  %s6 = scalar_select 0, %s5, %s3
  $region1: #{tpu_custom_call.1} parent=0
    #allocation2 [shape = 'u8[65536]{0}', space=vmem, size = 0x10000, scoped, tag = 'input window, operand 0']
    #allocation3 [shape = 's32[2]{0}', space=sflag, size = 0x8, scoped, tag = 'scoped memory for tpu_custom_call.1']
    #allocation4 [shape = 's32[2]{0}', space=sflag, size = 0x8, scoped, tag = 'scoped memory for tpu_custom_call.1']
    #allocation5 [shape = 'u8[65536]{0}', space=vmem, size = 0x10000, scoped, tag = 'input window, operand 1']
    #allocation6 [shape = 's32[2]{0}', space=sflag, size = 0x8, scoped, tag = 'scoped memory for tpu_custom_call.1']
    #allocation7 [shape = 'u8[294912]{0}', space=vmem, size = 0x48000, scoped, tag = 'output window, operand 0']
    %7 = vsyncpa [#allocation3], 0
    %s8 = scalar_lea.sflag [#allocation3], 1
    %9 = vsyncpa %s8, 0
    %10 = vsyncpa [#allocation6], 0
    %s11 = scalar_lea.sflag [#allocation6], 1
    %12 = vsyncpa %s11, 0
    %13 = vsyncpa [#allocation4], 0
    %s14 = scalar_lea.sflag [#allocation4], 1
    %15 = vsyncpa %s14, 0
    loop: start=0, step=1, limit=6
    $region2: #{tpu_custom_call.1} parent=1 // loop_pre_header
      _
    $region3: #{tpu_custom_call.1} parent=1 // loop_header
      %s17 = sphi 0, %s21
      %p18 = scmp.ge.s32.totalorder %s17, 6
      %s24 = sphi 0, %s36
      %s25 = sphi 0, %s32
      %s26 = sphi 0, %s24
      %s27 = sphi 0, %s25
      %s28 = sphi 0, %s26
      %s29 = sphi 0, %s27
      %s41 = sphi 0, %s43
      %s44 = sphi 0, %s41
      %s45 = sphi 0, %s44
      %s61 = sphi 0, %s45
      %s69 = sphi 0, %s71
      %s72 = sphi 0, %s69
      %s73 = sphi 0, %s72
      %s89 = sphi 0, %s73
      %s95 = sphi 0, %s97
      %s98 = sphi 0, %s95
      %s99 = sphi 0, %s98
      %s115 = sphi 0, %s99
    $region4: #{tpu_custom_call.1} parent=1 // loop_header_branch
      %20 = sbr.rel (%p18) target = $region8
    $region5: #{tpu_custom_call.1} parent=1 // loop_body
      %s22 = ssub.s32 %s17, 1
      %s23 = ssub.s32 %s17, 2
      %s30 = sadd.s32 1, %s25
      %p31 = scmp.ge.s32.totalorder %s30, 2
      %s32 = scalar_select %p31, 0, %s30
      %s33 = sadd.s32 1, %s24
      %s34 = scalar_select %p31, %s33, %s24
      %p35 = scmp.ge.s32.totalorder %s34, 2
      %s36 = scalar_select %p35, 0, %s34
      %s37 = ssub.s32 %s24, %s36
      %s38 = ssub.s32 %s25, %s32
      %s39 = sor.u32 %s37, %s38
      %p40 = scmp.eq.s32.totalorder %s39, 0
      %s42 = sadd.s32 %s41, 1
      %s43 = scalar_select %p40, %s41, %s42
      %p46 = pneg %p40
      %p47 = scmp.eq.s32.totalorder %s17, 3
      %p48 = por %p46, %p47
      %p49 = scmp.ne.s32.totalorder %s41, %s44
      %p50 = scmp.eq.s32.totalorder %s17, 0
      %p51 = por %p49, %p50
      %p52 = scmp.ne.s32.totalorder %s41, %s44
      %p53 = scmp.eq.s32.totalorder %s22, 3
      %p54 = por %p52, %p53
      %p55 = scmp.ne.s32.totalorder %s44, %s45
      %p56 = scmp.eq.s32.totalorder %s22, 0
      %p57 = por %p55, %p56
      %p58 = scmp.ne.s32.totalorder %s44, %s45
      %p59 = scmp.eq.s32.totalorder %s23, 3
      %p60 = por %p58, %p59
      %p62 = scmp.ne.s32.totalorder %s45, %s61
      %p63 = scmp.eq.s32.totalorder %s23, 0
      %p64 = por %p62, %p63
      %s65 = ssub.s32 %s24, %s36
      %s66 = ssub.s32 %s25, %s32
      %s67 = sor.u32 %s65, %s66
      %p68 = scmp.eq.s32.totalorder %s67, 0
      %s70 = sadd.s32 %s69, 1
      %s71 = scalar_select %p68, %s69, %s70
      %p74 = pneg %p68
      %p75 = scmp.eq.s32.totalorder %s17, 3
      %p76 = por %p74, %p75
      %p77 = scmp.ne.s32.totalorder %s69, %s72
      %p78 = scmp.eq.s32.totalorder %s17, 0
      %p79 = por %p77, %p78
      %p80 = scmp.ne.s32.totalorder %s69, %s72
      %p81 = scmp.eq.s32.totalorder %s22, 3
      %p82 = por %p80, %p81
      %p83 = scmp.ne.s32.totalorder %s72, %s73
      %p84 = scmp.eq.s32.totalorder %s22, 0
      %p85 = por %p83, %p84
      %p86 = scmp.ne.s32.totalorder %s72, %s73
      %p87 = scmp.eq.s32.totalorder %s23, 3
      %p88 = por %p86, %p87
      %p90 = scmp.ne.s32.totalorder %s73, %s89
      %p91 = scmp.eq.s32.totalorder %s23, 0
      %p92 = por %p90, %p91
      %s93 = ssub.s32 %s24, %s36
      %p94 = scmp.eq.s32.totalorder %s93, 0
      %s96 = sadd.s32 %s95, 1
      %s97 = scalar_select %p94, %s95, %s96
      %p100 = pneg %p94
      %p101 = scmp.eq.s32.totalorder %s17, 3
      %p102 = por %p100, %p101
      %p103 = scmp.ne.s32.totalorder %s95, %s98
      %p104 = scmp.eq.s32.totalorder %s17, 0
      %p105 = por %p103, %p104
      %p106 = scmp.ne.s32.totalorder %s95, %s98
      %p107 = scmp.eq.s32.totalorder %s22, 3
      %p108 = por %p106, %p107
      %p109 = scmp.ne.s32.totalorder %s98, %s99
      %p110 = scmp.eq.s32.totalorder %s22, 0
      %p111 = por %p109, %p110
      %p112 = scmp.ne.s32.totalorder %s98, %s99
      %p113 = scmp.eq.s32.totalorder %s23, 3
      %p114 = por %p112, %p113
      %p116 = scmp.ne.s32.totalorder %s99, %s115
      %p117 = scmp.eq.s32.totalorder %s23, 0
      %p118 = por %p116, %p117
      %p119 = scmp.le.s32.totalorder 1, %s17
      %p120 = scmp.lt.s32.totalorder %s17, 5
      %p121 = pnand %p119, %p120
      %p122 = pneg %p121
      // Predicated region
      $region9: #{tpu_custom_call.1} parent=5 // pred_check
        _
      $region10: #{tpu_custom_call.1} parent=5 // pred_check_branch
        %124 = sbr.rel (%p121) target = $region12
      $region11: #{tpu_custom_call.1} parent=5 // pred_region
        %s125 = ssub.s32 %s17, 1
      $region12: #{tpu_custom_call.1} parent=5 // pred_fallthru
        _
      %p126 = scmp.lt.s32.totalorder %s17, 4
      // Predicated region
      $region13: #{tpu_custom_call.1} parent=5 // pred_check
        %p127 = pneg %p126
      $region14: #{tpu_custom_call.1} parent=5 // pred_check_branch
        %129 = sbr.rel (%p127) target = $region16
      $region15: #{tpu_custom_call.1} parent=5 // pred_region
        // Predicated region
        $region17: #{tpu_custom_call.1} parent=15 // pred_check
          %p130 = pneg %p51
        $region18: #{tpu_custom_call.1} parent=15 // pred_check_branch
          %132 = sbr.rel (%p130) target = $region20
        $region19: #{tpu_custom_call.1} parent=15 // pred_region
          %s133 = sand.u32 %s41, 1
          %s134 = scalar_lea.sflag [#allocation3], %s133
          %s135 = sand.u32 %s41, 1
          %s136 = smul.addr %s135, 64
          %s137 = scalar_lea.vmem [#allocation2], %s136
          %s138 = smul.u32 4, %s25
          %s140 = ssub.s32 1024, 1024
          %141 = vsyncadd %s134, %s140
          %s142 = smul.addr %s138, 2
          %s143 = smul.addr %s24, 16
          %s144 = sadd.s32 %s142, %s143
          %s145 = smul.addr %s144, 128
          %s146 = scalar_lea.hbm %s0, %s145
          %s147 = sshll.u32 %s137, 4
          %s148 = int_to_ptr.vmem [resolvable:$true] %s147
          %153 = dma.hbm_to_vmem [thread:$0]  %s146, 1024, %s148, %s134, 128, 128, 8
        $region20: #{tpu_custom_call.1} parent=15 // pred_fallthru
          _
        // Predicated region
        $region21: #{tpu_custom_call.1} parent=15 // pred_check
          %p154 = pneg %p79
        $region22: #{tpu_custom_call.1} parent=15 // pred_check_branch
          %156 = sbr.rel (%p154) target = $region24
        $region23: #{tpu_custom_call.1} parent=15 // pred_region
          %s157 = sand.u32 %s69, 1
          %s158 = scalar_lea.sflag [#allocation6], %s157
          %s159 = sand.u32 %s69, 1
          %s160 = smul.addr %s159, 64
          %s161 = scalar_lea.vmem [#allocation5], %s160
          %s162 = smul.u32 4, %s25
          %s164 = ssub.s32 1024, 1024
          %165 = vsyncadd %s158, %s164
          %s166 = smul.addr %s162, 2
          %s167 = smul.addr %s24, 16
          %s168 = sadd.s32 %s166, %s167
          %s169 = smul.addr %s168, 128
          %s170 = scalar_lea.hbm %s1, %s169
          %s171 = sshll.u32 %s161, 4
          %s172 = int_to_ptr.vmem [resolvable:$true] %s171
          %177 = dma.hbm_to_vmem [thread:$0]  %s170, 1024, %s172, %s158, 128, 128, 8
        $region24: #{tpu_custom_call.1} parent=15 // pred_fallthru
          _
      $region16: #{tpu_custom_call.1} parent=5 // pred_fallthru
        _
      %p178 = scmp.le.s32.totalorder 1, %s17
      %p179 = scmp.lt.s32.totalorder %s17, 5
      %p180 = pnand %p178, %p179
      %p181 = pneg %p180
      // Predicated region
      $region25: #{tpu_custom_call.1} parent=5 // pred_check
        _
      $region26: #{tpu_custom_call.1} parent=5 // pred_check_branch
        %183 = sbr.rel (%p180) target = $region28
      $region27: #{tpu_custom_call.1} parent=5 // pred_region
        %s184 = ssub.s32 %s17, 1
        %s185 = sand.u32 %s44, 1
        %s186 = scalar_lea.sflag [#allocation3], %s185
        %s187 = sand.u32 %s44, 1
        %s188 = smul.addr %s187, 64
        %s189 = scalar_lea.vmem [#allocation2], %s188
        // Predicated region
        $region29: #{tpu_custom_call.1} parent=27 // pred_check
          %p190 = pneg %p57
        $region30: #{tpu_custom_call.1} parent=27 // pred_check_branch
          %192 = sbr.rel (%p190) target = $region32
        $region31: #{tpu_custom_call.1} parent=27 // pred_region
          %193 = dma.done %s186, 1024
        $region32: #{tpu_custom_call.1} parent=27 // pred_fallthru
          _
        %s194 = sand.u32 %s72, 1
        %s195 = scalar_lea.sflag [#allocation6], %s194
        %s196 = sand.u32 %s72, 1
        %s197 = smul.addr %s196, 64
        %s198 = scalar_lea.vmem [#allocation5], %s197
        // Predicated region
        $region33: #{tpu_custom_call.1} parent=27 // pred_check
          %p199 = pneg %p85
        $region34: #{tpu_custom_call.1} parent=27 // pred_check_branch
          %201 = sbr.rel (%p199) target = $region36
        $region35: #{tpu_custom_call.1} parent=27 // pred_region
          %202 = dma.done %s195, 1024
        $region36: #{tpu_custom_call.1} parent=27 // pred_fallthru
          _
        %s203 = sand.u32 %s44, 1
        %s204 = scalar_lea.sflag [#allocation3], %s203
        %s205 = sand.u32 %s44, 1
        %s206 = smul.addr %s205, 64
        %s207 = scalar_lea.vmem [#allocation2], %s206
        %p208 = pneg %p57
        %p209 = pneg %p54
        %s210 = sand.u32 %s72, 1
        %s211 = scalar_lea.sflag [#allocation6], %s210
        %s212 = sand.u32 %s72, 1
        %s213 = smul.addr %s212, 64
        %s214 = scalar_lea.vmem [#allocation5], %s213
        %p215 = pneg %p85
        %p216 = pneg %p82
        %p217 = pneg %p111
        %p218 = pneg %p108
        %s219 = sand.u32 %s98, 1
        %s220 = scalar_lea.sflag [#allocation4], %s219
        %s221 = sand.u32 %s98, 1
        %s222 = smul.addr %s221, 288
        %s223 = scalar_lea.vmem [#allocation7], %s222
        %s224 = smul.u32 4, %s27
        %s225 = smul.u32 4, %s27
        %p226 = scmp.eq.s32.totalorder %s27, 0
        // Predicated region
        $region37: #{tpu_custom_call.1} parent=27 // pred_check
          %p227 = pneg %p226
        $region38: #{tpu_custom_call.1} parent=27 // pred_check_branch
          %229 = sbr.rel (%p227) target = $region40
        $region39: #{tpu_custom_call.1} parent=27 // pred_region
          %230 = vst [vmem:[%s223] sm:$0xff] 0.0
          %231 = vst [vmem:[%s223 + $0x8] sm:$0xff] 0.0
          %232 = vst [vmem:[%s223 + $0x10] sm:$0xff] 0.0
          %233 = vst [vmem:[%s223 + $0x18] sm:$0xff] 0.0
          %234 = vst [vmem:[%s223 + $0x20] sm:$0xff] 0.0
          %235 = vst [vmem:[%s223 + $0x28] sm:$0xff] 0.0
          %236 = vst [vmem:[%s223 + $0x30] sm:$0xff] 0.0
          %237 = vst [vmem:[%s223 + $0x38] sm:$0xff] 0.0
          %238 = vst [vmem:[%s223 + $0x40] sm:$0xff] 0.0
          %239 = vst [vmem:[%s223 + $0x48] sm:$0xff] 0.0
          %240 = vst [vmem:[%s223 + $0x50] sm:$0xff] 0.0
          %241 = vst [vmem:[%s223 + $0x58] sm:$0xff] 0.0
          %242 = vst [vmem:[%s223 + $0x60] sm:$0xff] 0.0
          %243 = vst [vmem:[%s223 + $0x68] sm:$0xff] 0.0
          %244 = vst [vmem:[%s223 + $0x70] sm:$0xff] 0.0
          %245 = vst [vmem:[%s223 + $0x78] sm:$0xff] 0.0
          %246 = vst [vmem:[%s223 + $0x80] sm:$0xff] 0.0
          %247 = vst [vmem:[%s223 + $0x88] sm:$0xff] 0.0
          %248 = vst [vmem:[%s223 + $0x90] sm:$0xff] 0.0
          %249 = vst [vmem:[%s223 + $0x98] sm:$0xff] 0.0
          %250 = vst [vmem:[%s223 + $0xa0] sm:$0xff] 0.0
          %251 = vst [vmem:[%s223 + $0xa8] sm:$0xff] 0.0
          %252 = vst [vmem:[%s223 + $0xb0] sm:$0xff] 0.0
          %253 = vst [vmem:[%s223 + $0xb8] sm:$0xff] 0.0
          %254 = vst [vmem:[%s223 + $0xc0] sm:$0xff] 0.0
          %255 = vst [vmem:[%s223 + $0xc8] sm:$0xff] 0.0
          %256 = vst [vmem:[%s223 + $0xd0] sm:$0xff] 0.0
          %257 = vst [vmem:[%s223 + $0xd8] sm:$0xff] 0.0
          %258 = vst [vmem:[%s223 + $0xe0] sm:$0xff] 0.0
          %259 = vst [vmem:[%s223 + $0xe8] sm:$0xff] 0.0
          %260 = vst [vmem:[%s223 + $0xf0] sm:$0xff] 0.0
          %261 = vst [vmem:[%s223 + $0xf8] sm:$0xff] 0.0
          %262 = vst [vmem:[%s223 + $0x100] sm:$0xff] 0.0
          %263 = vst [vmem:[%s223 + $0x108] sm:$0xff] 0.0
          %264 = vst [vmem:[%s223 + $0x110] sm:$0xff] 0.0
          %265 = vst [vmem:[%s223 + $0x118] sm:$0xff] 0.0
        $region40: #{tpu_custom_call.1} parent=27 // pred_fallthru
          _
        %v266 = vld [vmem:[%s189] sm:$0xff]
        %v267 = vld [vmem:[%s189 + $0x8] sm:$0xff]
        %v268 = vld [vmem:[%s189 + $0x10] sm:$0xff]
        %v269 = vld [vmem:[%s189 + $0x18] sm:$0xff]
        %v270 = vld [vmem:[%s189 + $0x20] sm:$0xff]
        %v271 = vld [vmem:[%s189 + $0x28] sm:$0xff]
        %v272 = vld [vmem:[%s189 + $0x30] sm:$0xff]
        %v273 = vld [vmem:[%s189 + $0x38] sm:$0xff]
        %v274 = vld [vmem:[%s198] sm:$0xff]
        %v275 = vld [vmem:[%s198 + $0x8] sm:$0xff]
        %v276 = vld [vmem:[%s198 + $0x10] sm:$0xff]
        %v277 = vld [vmem:[%s198 + $0x18] sm:$0xff]
        %v278 = vld [vmem:[%s198 + $0x20] sm:$0xff]
        %v279 = vld [vmem:[%s198 + $0x28] sm:$0xff]
        %v280 = vld [vmem:[%s198 + $0x30] sm:$0xff]
        %v281 = vld [vmem:[%s198 + $0x38] sm:$0xff]
        %290 = vrot.lane.b32.xlu0 %v266, 16
        %v291 = vpop.permute.xlu0 %290
        %292 = vrot.lane.b32.xlu0 %v267, 16
        %v293 = vpop.permute.xlu0 %292
        %294 = vrot.lane.b32.xlu0 %v268, 16
        %v295 = vpop.permute.xlu0 %294
        %296 = vrot.lane.b32.xlu0 %v269, 16
        %v297 = vpop.permute.xlu0 %296
        %298 = vrot.lane.b32.xlu0 %v270, 16
        %v299 = vpop.permute.xlu0 %298
        %300 = vrot.lane.b32.xlu0 %v271, 16
        %v301 = vpop.permute.xlu0 %300
        %302 = vrot.lane.b32.xlu0 %v272, 16
        %v303 = vpop.permute.xlu0 %302
        %304 = vrot.lane.b32.xlu0 %v273, 16
        %v305 = vpop.permute.xlu0 %304
        %314 = vrot.lane.b32.xlu0 %v266, 32
        %v315 = vpop.permute.xlu0 %314
        %316 = vrot.lane.b32.xlu0 %v267, 32
        %v317 = vpop.permute.xlu0 %316
        %318 = vrot.lane.b32.xlu0 %v268, 32
        %v319 = vpop.permute.xlu0 %318
        %320 = vrot.lane.b32.xlu0 %v269, 32
        %v321 = vpop.permute.xlu0 %320
        %322 = vrot.lane.b32.xlu0 %v270, 32
        %v323 = vpop.permute.xlu0 %322
        %324 = vrot.lane.b32.xlu0 %v271, 32
        %v325 = vpop.permute.xlu0 %324
        %326 = vrot.lane.b32.xlu0 %v272, 32
        %v327 = vpop.permute.xlu0 %326
        %328 = vrot.lane.b32.xlu0 %v273, 32
        %v329 = vpop.permute.xlu0 %328
        %338 = vrot.lane.b32.xlu0 %v266, 48
        %v339 = vpop.permute.xlu0 %338
        %340 = vrot.lane.b32.xlu0 %v267, 48
        %v341 = vpop.permute.xlu0 %340
        %342 = vrot.lane.b32.xlu0 %v268, 48
        %v343 = vpop.permute.xlu0 %342
        %344 = vrot.lane.b32.xlu0 %v269, 48
        %v345 = vpop.permute.xlu0 %344
        %346 = vrot.lane.b32.xlu0 %v270, 48
        %v347 = vpop.permute.xlu0 %346
        %348 = vrot.lane.b32.xlu0 %v271, 48
        %v349 = vpop.permute.xlu0 %348
        %350 = vrot.lane.b32.xlu0 %v272, 48
        %v351 = vpop.permute.xlu0 %350
        %352 = vrot.lane.b32.xlu0 %v273, 48
        %v353 = vpop.permute.xlu0 %352
        %362 = vrot.lane.b32.xlu0 %v266, 64
        %v363 = vpop.permute.xlu0 %362
        %364 = vrot.lane.b32.xlu0 %v267, 64
        %v365 = vpop.permute.xlu0 %364
        %366 = vrot.lane.b32.xlu0 %v268, 64
        %v367 = vpop.permute.xlu0 %366
        %368 = vrot.lane.b32.xlu0 %v269, 64
        %v369 = vpop.permute.xlu0 %368
        %370 = vrot.lane.b32.xlu0 %v270, 64
        %v371 = vpop.permute.xlu0 %370
        %372 = vrot.lane.b32.xlu0 %v271, 64
        %v373 = vpop.permute.xlu0 %372
        %374 = vrot.lane.b32.xlu0 %v272, 64
        %v375 = vpop.permute.xlu0 %374
        %376 = vrot.lane.b32.xlu0 %v273, 64
        %v377 = vpop.permute.xlu0 %376
        %386 = vrot.lane.b32.xlu0 %v266, 80
        %v387 = vpop.permute.xlu0 %386
        %388 = vrot.lane.b32.xlu0 %v267, 80
        %v389 = vpop.permute.xlu0 %388
        %390 = vrot.lane.b32.xlu0 %v268, 80
        %v391 = vpop.permute.xlu0 %390
        %392 = vrot.lane.b32.xlu0 %v269, 80
        %v393 = vpop.permute.xlu0 %392
        %394 = vrot.lane.b32.xlu0 %v270, 80
        %v395 = vpop.permute.xlu0 %394
        %396 = vrot.lane.b32.xlu0 %v271, 80
        %v397 = vpop.permute.xlu0 %396
        %398 = vrot.lane.b32.xlu0 %v272, 80
        %v399 = vpop.permute.xlu0 %398
        %400 = vrot.lane.b32.xlu0 %v273, 80
        %v401 = vpop.permute.xlu0 %400
        %410 = vrot.lane.b32.xlu0 %v266, 96
        %v411 = vpop.permute.xlu0 %410
        %412 = vrot.lane.b32.xlu0 %v267, 96
        %v413 = vpop.permute.xlu0 %412
        %414 = vrot.lane.b32.xlu0 %v268, 96
        %v415 = vpop.permute.xlu0 %414
        %416 = vrot.lane.b32.xlu0 %v269, 96
        %v417 = vpop.permute.xlu0 %416
        %418 = vrot.lane.b32.xlu0 %v270, 96
        %v419 = vpop.permute.xlu0 %418
        %420 = vrot.lane.b32.xlu0 %v271, 96
        %v421 = vpop.permute.xlu0 %420
        %422 = vrot.lane.b32.xlu0 %v272, 96
        %v423 = vpop.permute.xlu0 %422
        %424 = vrot.lane.b32.xlu0 %v273, 96
        %v425 = vpop.permute.xlu0 %424
        %434 = vrot.lane.b32.xlu0 %v266, 112
        %v435 = vpop.permute.xlu0 %434
        %436 = vrot.lane.b32.xlu0 %v267, 112
        %v437 = vpop.permute.xlu0 %436
        %438 = vrot.lane.b32.xlu0 %v268, 112
        %v439 = vpop.permute.xlu0 %438
        %440 = vrot.lane.b32.xlu0 %v269, 112
        %v441 = vpop.permute.xlu0 %440
        %442 = vrot.lane.b32.xlu0 %v270, 112
        %v443 = vpop.permute.xlu0 %442
        %444 = vrot.lane.b32.xlu0 %v271, 112
        %v445 = vpop.permute.xlu0 %444
        %446 = vrot.lane.b32.xlu0 %v272, 112
        %v447 = vpop.permute.xlu0 %446
        %448 = vrot.lane.b32.xlu0 %v273, 112
        %v449 = vpop.permute.xlu0 %448
        %vm458 = vcmask 130048
        %v459 = vsel %vm458, %v266, %v291
        %v460 = vsel %vm458, %v267, %v293
        %v461 = vsel %vm458, %v268, %v295
        %v462 = vsel %vm458, %v269, %v297
        %v463 = vsel %vm458, %v270, %v299
        %v464 = vsel %vm458, %v271, %v301
        %v465 = vsel %vm458, %v272, %v303
        %v466 = vsel %vm458, %v273, %v305
        %vm467 = vcmask 261120
        %v468 = vsel %vm467, %v459, %v315
        %v469 = vsel %vm467, %v460, %v317
        %v470 = vsel %vm467, %v461, %v319
        %v471 = vsel %vm467, %v462, %v321
        %v472 = vsel %vm467, %v463, %v323
        %v473 = vsel %vm467, %v464, %v325
        %v474 = vsel %vm467, %v465, %v327
        %v475 = vsel %vm467, %v466, %v329
        %vm476 = vcmask 392192
        %v477 = vsel %vm476, %v468, %v339
        %v478 = vsel %vm476, %v469, %v341
        %v479 = vsel %vm476, %v470, %v343
        %v480 = vsel %vm476, %v471, %v345
        %v481 = vsel %vm476, %v472, %v347
        %v482 = vsel %vm476, %v473, %v349
        %v483 = vsel %vm476, %v474, %v351
        %v484 = vsel %vm476, %v475, %v353
        %vm485 = vcmask 523264
        %v486 = vsel %vm485, %v477, %v363
        %v487 = vsel %vm485, %v478, %v365
        %v488 = vsel %vm485, %v479, %v367
        %v489 = vsel %vm485, %v480, %v369
        %v490 = vsel %vm485, %v481, %v371
        %v491 = vsel %vm485, %v482, %v373
        %v492 = vsel %vm485, %v483, %v375
        %v493 = vsel %vm485, %v484, %v377
        %vm494 = vcmask 654336
        %v495 = vsel %vm494, %v486, %v387
        %v496 = vsel %vm494, %v487, %v389
        %v497 = vsel %vm494, %v488, %v391
        %v498 = vsel %vm494, %v489, %v393
        %v499 = vsel %vm494, %v490, %v395
        %v500 = vsel %vm494, %v491, %v397
        %v501 = vsel %vm494, %v492, %v399
        %v502 = vsel %vm494, %v493, %v401
        %vm503 = vcmask 785408
        %v504 = vsel %vm503, %v495, %v411
        %v505 = vsel %vm503, %v496, %v413
        %v506 = vsel %vm503, %v497, %v415
        %v507 = vsel %vm503, %v498, %v417
        %v508 = vsel %vm503, %v499, %v419
        %v509 = vsel %vm503, %v500, %v421
        %v510 = vsel %vm503, %v501, %v423
        %v511 = vsel %vm503, %v502, %v425
        %vm512 = vcmask 916480
        %v513 = vsel %vm512, %v504, %v435
        %v514 = vsel %vm512, %v505, %v437
        %v515 = vsel %vm512, %v506, %v439
        %v516 = vsel %vm512, %v507, %v441
        %v517 = vsel %vm512, %v508, %v443
        %v518 = vsel %vm512, %v509, %v445
        %v519 = vsel %vm512, %v510, %v447
        %v520 = vsel %vm512, %v511, %v449
        %v521 = vsel %vm458, %v266, 0.0
        %v522 = vsel %vm458, %v267, 0.0
        %v523 = vsel %vm458, %v268, 0.0
        %v524 = vsel %vm458, %v269, 0.0
        %v525 = vsel %vm458, %v270, 0.0
        %v526 = vsel %vm458, %v271, 0.0
        %v527 = vsel %vm458, %v272, 0.0
        %v528 = vsel %vm458, %v273, 0.0
        %530 = vset.pattern.permute.xlu0 0
        %531 = vperm.xlu0 %530, %v274
        %v532 = vpop.permute.xlu0 %531
        %535 = vset.pattern.permute.xlu0 0
        %536 = vperm.xlu0 %535, %v275
        %v537 = vpop.permute.xlu0 %536
        %540 = vset.pattern.permute.xlu0 0
        %541 = vperm.xlu0 %540, %v276
        %v542 = vpop.permute.xlu0 %541
        %545 = vset.pattern.permute.xlu0 0
        %546 = vperm.xlu0 %545, %v277
        %v547 = vpop.permute.xlu0 %546
        %550 = vset.pattern.permute.xlu0 0
        %551 = vperm.xlu0 %550, %v278
        %v552 = vpop.permute.xlu0 %551
        %555 = vset.pattern.permute.xlu0 0
        %556 = vperm.xlu0 %555, %v279
        %v557 = vpop.permute.xlu0 %556
        %560 = vset.pattern.permute.xlu0 0
        %561 = vperm.xlu0 %560, %v280
        %v562 = vpop.permute.xlu0 %561
        %565 = vset.pattern.permute.xlu0 0
        %566 = vperm.xlu0 %565, %v281
        %v567 = vpop.permute.xlu0 %566
        %569 = vset.pattern.permute.xlu0 15
        %570 = vperm.xlu0 %569, %v274
        %v571 = vpop.permute.xlu0 %570
        %573 = vset.pattern.permute.xlu0 15
        %574 = vperm.xlu0 %573, %v275
        %v575 = vpop.permute.xlu0 %574
        %577 = vset.pattern.permute.xlu0 15
        %578 = vperm.xlu0 %577, %v276
        %v579 = vpop.permute.xlu0 %578
        %581 = vset.pattern.permute.xlu0 15
        %582 = vperm.xlu0 %581, %v277
        %v583 = vpop.permute.xlu0 %582
        %585 = vset.pattern.permute.xlu0 15
        %586 = vperm.xlu0 %585, %v278
        %v587 = vpop.permute.xlu0 %586
        %589 = vset.pattern.permute.xlu0 15
        %590 = vperm.xlu0 %589, %v279
        %v591 = vpop.permute.xlu0 %590
        %593 = vset.pattern.permute.xlu0 15
        %594 = vperm.xlu0 %593, %v280
        %v595 = vpop.permute.xlu0 %594
        %597 = vset.pattern.permute.xlu0 15
        %598 = vperm.xlu0 %597, %v281
        %v599 = vpop.permute.xlu0 %598
        %601 = vrot.lane.b32.xlu0 %v274, 4
        %v602 = vpop.permute.xlu0 %601
        %603 = vrot.lane.b32.xlu0 %v275, 4
        %v604 = vpop.permute.xlu0 %603
        %605 = vrot.lane.b32.xlu0 %v276, 4
        %v606 = vpop.permute.xlu0 %605
        %607 = vrot.lane.b32.xlu0 %v277, 4
        %v608 = vpop.permute.xlu0 %607
        %609 = vrot.lane.b32.xlu0 %v278, 4
        %v610 = vpop.permute.xlu0 %609
        %611 = vrot.lane.b32.xlu0 %v279, 4
        %v612 = vpop.permute.xlu0 %611
        %613 = vrot.lane.b32.xlu0 %v280, 4
        %v614 = vpop.permute.xlu0 %613
        %615 = vrot.lane.b32.xlu0 %v281, 4
        %v616 = vpop.permute.xlu0 %615
        %vm625 = vcmask 31744
        %v626 = vsel %vm625, %v532, %v602
        %v627 = vsel %vm625, %v537, %v604
        %v628 = vsel %vm625, %v542, %v606
        %v629 = vsel %vm625, %v547, %v608
        %v630 = vsel %vm625, %v552, %v610
        %v631 = vsel %vm625, %v557, %v612
        %v632 = vsel %vm625, %v562, %v614
        %v633 = vsel %vm625, %v567, %v616
        %vm634 = vcmask 162816
        %v635 = vsel %vm634, %v626, %v571
        %v636 = vsel %vm634, %v627, %v575
        %v637 = vsel %vm634, %v628, %v579
        %v638 = vsel %vm634, %v629, %v583
        %v639 = vsel %vm634, %v630, %v587
        %v640 = vsel %vm634, %v631, %v591
        %v641 = vsel %vm634, %v632, %v595
        %v642 = vsel %vm634, %v633, %v599
        %v643 = vlaneseq
        %v644 = vshrl.u32 %v643, 7
        %v645 = vsub.s32 0, %v644
        %v646 = vrot.slane %v635, %v645
        %v647 = vlaneseq
        %v648 = vshrl.u32 %v647, 7
        %v649 = vsub.s32 0, %v648
        %v650 = vrot.slane %v637, %v649
        %v651 = vlaneseq
        %v652 = vshrl.u32 %v651, 7
        %v653 = vsub.s32 0, %v652
        %v654 = vrot.slane %v639, %v653
        %v655 = vlaneseq
        %v656 = vshrl.u32 %v655, 7
        %v657 = vsub.s32 0, %v656
        %v658 = vrot.slane %v641, %v657
        %v659 = vlaneseq
        %v660 = vshrl.u32 %v659, 7
        %v661 = vsub.s32 7, %v660
        %v662 = vrot.slane %v636, %v661
        %v663 = vlaneseq
        %v664 = vshrl.u32 %v663, 7
        %v665 = vsub.s32 7, %v664
        %v666 = vrot.slane %v638, %v665
        %v667 = vlaneseq
        %v668 = vshrl.u32 %v667, 7
        %v669 = vsub.s32 7, %v668
        %v670 = vrot.slane %v640, %v669
        %v671 = vlaneseq
        %v672 = vshrl.u32 %v671, 7
        %v673 = vsub.s32 7, %v672
        %v674 = vrot.slane %v642, %v673
        %vm683 = vcmask 1043456
        %v684 = vrot.slane %v635, 4
        %v685 = vrot.slane %v636, 4
        %v686 = vsel %vm683, %v684, %v685
        %v687 = vrot.slane %v637, 4
        %v688 = vrot.slane %v638, 4
        %v689 = vsel %vm683, %v687, %v688
        %v690 = vrot.slane %v639, 4
        %v691 = vrot.slane %v640, 4
        %v692 = vsel %vm683, %v690, %v691
        %v693 = vrot.slane %v641, 4
        %v694 = vrot.slane %v642, 4
        %v695 = vsel %vm683, %v693, %v694
        %v708 = vsel %vm683, %v646, %v684
        %v709 = vsel %vm683, %v650, %v687
        %v710 = vsel %vm683, %v654, %v690
        %v711 = vsel %vm683, %v658, %v693
        %v712 = vsel %vm683, %v685, %v662
        %v713 = vsel %vm683, %v688, %v666
        %v714 = vsel %vm683, %v691, %v670
        %v715 = vsel %vm683, %v694, %v674
        %724 = vrot.lane.b32.xlu0 %v708, 15
        %v725 = vpop.permute.xlu0 %724
        %726 = vrot.lane.b32.xlu0 %v686, 15
        %v727 = vpop.permute.xlu0 %726
        %728 = vrot.lane.b32.xlu0 %v712, 15
        %v729 = vpop.permute.xlu0 %728
        %730 = vrot.lane.b32.xlu0 %v709, 15
        %v731 = vpop.permute.xlu0 %730
        %732 = vrot.lane.b32.xlu0 %v689, 15
        %v733 = vpop.permute.xlu0 %732
        %734 = vrot.lane.b32.xlu0 %v713, 15
        %v735 = vpop.permute.xlu0 %734
        %736 = vrot.lane.b32.xlu0 %v710, 15
        %v737 = vpop.permute.xlu0 %736
        %738 = vrot.lane.b32.xlu0 %v692, 15
        %v739 = vpop.permute.xlu0 %738
        %740 = vrot.lane.b32.xlu0 %v714, 15
        %v741 = vpop.permute.xlu0 %740
        %742 = vrot.lane.b32.xlu0 %v711, 15
        %v743 = vpop.permute.xlu0 %742
        %744 = vrot.lane.b32.xlu0 %v695, 15
        %v745 = vpop.permute.xlu0 %744
        %746 = vrot.lane.b32.xlu0 %v715, 15
        %v747 = vpop.permute.xlu0 %746
        %760 = vrot.lane.b32.xlu0 %v708, 30
        %v761 = vpop.permute.xlu0 %760
        %762 = vrot.lane.b32.xlu0 %v686, 30
        %v763 = vpop.permute.xlu0 %762
        %764 = vrot.lane.b32.xlu0 %v712, 30
        %v765 = vpop.permute.xlu0 %764
        %766 = vrot.lane.b32.xlu0 %v709, 30
        %v767 = vpop.permute.xlu0 %766
        %768 = vrot.lane.b32.xlu0 %v689, 30
        %v769 = vpop.permute.xlu0 %768
        %770 = vrot.lane.b32.xlu0 %v713, 30
        %v771 = vpop.permute.xlu0 %770
        %772 = vrot.lane.b32.xlu0 %v710, 30
        %v773 = vpop.permute.xlu0 %772
        %774 = vrot.lane.b32.xlu0 %v692, 30
        %v775 = vpop.permute.xlu0 %774
        %776 = vrot.lane.b32.xlu0 %v714, 30
        %v777 = vpop.permute.xlu0 %776
        %778 = vrot.lane.b32.xlu0 %v711, 30
        %v779 = vpop.permute.xlu0 %778
        %780 = vrot.lane.b32.xlu0 %v695, 30
        %v781 = vpop.permute.xlu0 %780
        %782 = vrot.lane.b32.xlu0 %v715, 30
        %v783 = vpop.permute.xlu0 %782
        %796 = vrot.lane.b32.xlu0 %v708, 45
        %v797 = vpop.permute.xlu0 %796
        %798 = vrot.lane.b32.xlu0 %v686, 45
        %v799 = vpop.permute.xlu0 %798
        %800 = vrot.lane.b32.xlu0 %v712, 45
        %v801 = vpop.permute.xlu0 %800
        %802 = vrot.lane.b32.xlu0 %v709, 45
        %v803 = vpop.permute.xlu0 %802
        %804 = vrot.lane.b32.xlu0 %v689, 45
        %v805 = vpop.permute.xlu0 %804
        %806 = vrot.lane.b32.xlu0 %v713, 45
        %v807 = vpop.permute.xlu0 %806
        %808 = vrot.lane.b32.xlu0 %v710, 45
        %v809 = vpop.permute.xlu0 %808
        %810 = vrot.lane.b32.xlu0 %v692, 45
        %v811 = vpop.permute.xlu0 %810
        %812 = vrot.lane.b32.xlu0 %v714, 45
        %v813 = vpop.permute.xlu0 %812
        %814 = vrot.lane.b32.xlu0 %v711, 45
        %v815 = vpop.permute.xlu0 %814
        %816 = vrot.lane.b32.xlu0 %v695, 45
        %v817 = vpop.permute.xlu0 %816
        %818 = vrot.lane.b32.xlu0 %v715, 45
        %v819 = vpop.permute.xlu0 %818
        %832 = vrot.lane.b32.xlu0 %v708, 60
        %v833 = vpop.permute.xlu0 %832
        %834 = vrot.lane.b32.xlu0 %v686, 60
        %v835 = vpop.permute.xlu0 %834
        %836 = vrot.lane.b32.xlu0 %v712, 60
        %v837 = vpop.permute.xlu0 %836
        %838 = vrot.lane.b32.xlu0 %v709, 60
        %v839 = vpop.permute.xlu0 %838
        %840 = vrot.lane.b32.xlu0 %v689, 60
        %v841 = vpop.permute.xlu0 %840
        %842 = vrot.lane.b32.xlu0 %v713, 60
        %v843 = vpop.permute.xlu0 %842
        %844 = vrot.lane.b32.xlu0 %v710, 60
        %v845 = vpop.permute.xlu0 %844
        %846 = vrot.lane.b32.xlu0 %v692, 60
        %v847 = vpop.permute.xlu0 %846
        %848 = vrot.lane.b32.xlu0 %v714, 60
        %v849 = vpop.permute.xlu0 %848
        %850 = vrot.lane.b32.xlu0 %v711, 60
        %v851 = vpop.permute.xlu0 %850
        %852 = vrot.lane.b32.xlu0 %v695, 60
        %v853 = vpop.permute.xlu0 %852
        %854 = vrot.lane.b32.xlu0 %v715, 60
        %v855 = vpop.permute.xlu0 %854
        %868 = vrot.lane.b32.xlu0 %v708, 75
        %v869 = vpop.permute.xlu0 %868
        %870 = vrot.lane.b32.xlu0 %v686, 75
        %v871 = vpop.permute.xlu0 %870
        %872 = vrot.lane.b32.xlu0 %v712, 75
        %v873 = vpop.permute.xlu0 %872
        %874 = vrot.lane.b32.xlu0 %v709, 75
        %v875 = vpop.permute.xlu0 %874
        %876 = vrot.lane.b32.xlu0 %v689, 75
        %v877 = vpop.permute.xlu0 %876
        %878 = vrot.lane.b32.xlu0 %v713, 75
        %v879 = vpop.permute.xlu0 %878
        %880 = vrot.lane.b32.xlu0 %v710, 75
        %v881 = vpop.permute.xlu0 %880
        %882 = vrot.lane.b32.xlu0 %v692, 75
        %v883 = vpop.permute.xlu0 %882
        %884 = vrot.lane.b32.xlu0 %v714, 75
        %v885 = vpop.permute.xlu0 %884
        %886 = vrot.lane.b32.xlu0 %v711, 75
        %v887 = vpop.permute.xlu0 %886
        %888 = vrot.lane.b32.xlu0 %v695, 75
        %v889 = vpop.permute.xlu0 %888
        %890 = vrot.lane.b32.xlu0 %v715, 75
        %v891 = vpop.permute.xlu0 %890
        %904 = vrot.lane.b32.xlu0 %v708, 90
        %v905 = vpop.permute.xlu0 %904
        %906 = vrot.lane.b32.xlu0 %v686, 90
        %v907 = vpop.permute.xlu0 %906
        %908 = vrot.lane.b32.xlu0 %v712, 90
        %v909 = vpop.permute.xlu0 %908
        %910 = vrot.lane.b32.xlu0 %v709, 90
        %v911 = vpop.permute.xlu0 %910
        %912 = vrot.lane.b32.xlu0 %v689, 90
        %v913 = vpop.permute.xlu0 %912
        %914 = vrot.lane.b32.xlu0 %v713, 90
        %v915 = vpop.permute.xlu0 %914
        %916 = vrot.lane.b32.xlu0 %v710, 90
        %v917 = vpop.permute.xlu0 %916
        %918 = vrot.lane.b32.xlu0 %v692, 90
        %v919 = vpop.permute.xlu0 %918
        %920 = vrot.lane.b32.xlu0 %v714, 90
        %v921 = vpop.permute.xlu0 %920
        %922 = vrot.lane.b32.xlu0 %v711, 90
        %v923 = vpop.permute.xlu0 %922
        %924 = vrot.lane.b32.xlu0 %v695, 90
        %v925 = vpop.permute.xlu0 %924
        %926 = vrot.lane.b32.xlu0 %v715, 90
        %v927 = vpop.permute.xlu0 %926
        %940 = vrot.lane.b32.xlu0 %v708, 105
        %v941 = vpop.permute.xlu0 %940
        %942 = vrot.lane.b32.xlu0 %v686, 105
        %v943 = vpop.permute.xlu0 %942
        %944 = vrot.lane.b32.xlu0 %v712, 105
        %v945 = vpop.permute.xlu0 %944
        %946 = vrot.lane.b32.xlu0 %v709, 105
        %v947 = vpop.permute.xlu0 %946
        %948 = vrot.lane.b32.xlu0 %v689, 105
        %v949 = vpop.permute.xlu0 %948
        %950 = vrot.lane.b32.xlu0 %v713, 105
        %v951 = vpop.permute.xlu0 %950
        %952 = vrot.lane.b32.xlu0 %v710, 105
        %v953 = vpop.permute.xlu0 %952
        %954 = vrot.lane.b32.xlu0 %v692, 105
        %v955 = vpop.permute.xlu0 %954
        %956 = vrot.lane.b32.xlu0 %v714, 105
        %v957 = vpop.permute.xlu0 %956
        %958 = vrot.lane.b32.xlu0 %v711, 105
        %v959 = vpop.permute.xlu0 %958
        %960 = vrot.lane.b32.xlu0 %v695, 105
        %v961 = vpop.permute.xlu0 %960
        %962 = vrot.lane.b32.xlu0 %v715, 105
        %v963 = vpop.permute.xlu0 %962
        %976 = vrot.lane.b32.xlu0 %v708, 120
        %v977 = vpop.permute.xlu0 %976
        %978 = vrot.lane.b32.xlu0 %v686, 120
        %v979 = vpop.permute.xlu0 %978
        %980 = vrot.lane.b32.xlu0 %v712, 120
        %v981 = vpop.permute.xlu0 %980
        %982 = vrot.lane.b32.xlu0 %v709, 120
        %v983 = vpop.permute.xlu0 %982
        %984 = vrot.lane.b32.xlu0 %v689, 120
        %v985 = vpop.permute.xlu0 %984
        %986 = vrot.lane.b32.xlu0 %v713, 120
        %v987 = vpop.permute.xlu0 %986
        %988 = vrot.lane.b32.xlu0 %v710, 120
        %v989 = vpop.permute.xlu0 %988
        %990 = vrot.lane.b32.xlu0 %v692, 120
        %v991 = vpop.permute.xlu0 %990
        %992 = vrot.lane.b32.xlu0 %v714, 120
        %v993 = vpop.permute.xlu0 %992
        %994 = vrot.lane.b32.xlu0 %v711, 120
        %v995 = vpop.permute.xlu0 %994
        %996 = vrot.lane.b32.xlu0 %v695, 120
        %v997 = vpop.permute.xlu0 %996
        %998 = vrot.lane.b32.xlu0 %v715, 120
        %v999 = vpop.permute.xlu0 %998
        %v1012 = vsel %vm458, %v708, %v725
        %v1013 = vsel %vm458, %v686, %v727
        %v1014 = vsel %vm458, %v712, %v729
        %v1015 = vsel %vm458, %v709, %v731
        %v1016 = vsel %vm458, %v689, %v733
        %v1017 = vsel %vm458, %v713, %v735
        %v1018 = vsel %vm458, %v710, %v737
        %v1019 = vsel %vm458, %v692, %v739
        %v1020 = vsel %vm458, %v714, %v741
        %v1021 = vsel %vm458, %v711, %v743
        %v1022 = vsel %vm458, %v695, %v745
        %v1023 = vsel %vm458, %v715, %v747
        %v1024 = vsel %vm467, %v1012, %v761
        %v1025 = vsel %vm467, %v1013, %v763
        %v1026 = vsel %vm467, %v1014, %v765
        %v1027 = vsel %vm467, %v1015, %v767
        %v1028 = vsel %vm467, %v1016, %v769
        %v1029 = vsel %vm467, %v1017, %v771
        %v1030 = vsel %vm467, %v1018, %v773
        %v1031 = vsel %vm467, %v1019, %v775
        %v1032 = vsel %vm467, %v1020, %v777
        %v1033 = vsel %vm467, %v1021, %v779
        %v1034 = vsel %vm467, %v1022, %v781
        %v1035 = vsel %vm467, %v1023, %v783
        %v1036 = vsel %vm476, %v1024, %v797
        %v1037 = vsel %vm476, %v1025, %v799
        %v1038 = vsel %vm476, %v1026, %v801
        %v1039 = vsel %vm476, %v1027, %v803
        %v1040 = vsel %vm476, %v1028, %v805
        %v1041 = vsel %vm476, %v1029, %v807
        %v1042 = vsel %vm476, %v1030, %v809
        %v1043 = vsel %vm476, %v1031, %v811
        %v1044 = vsel %vm476, %v1032, %v813
        %v1045 = vsel %vm476, %v1033, %v815
        %v1046 = vsel %vm476, %v1034, %v817
        %v1047 = vsel %vm476, %v1035, %v819
        %v1048 = vsel %vm485, %v1036, %v833
        %v1049 = vsel %vm485, %v1037, %v835
        %v1050 = vsel %vm485, %v1038, %v837
        %v1051 = vsel %vm485, %v1039, %v839
        %v1052 = vsel %vm485, %v1040, %v841
        %v1053 = vsel %vm485, %v1041, %v843
        %v1054 = vsel %vm485, %v1042, %v845
        %v1055 = vsel %vm485, %v1043, %v847
        %v1056 = vsel %vm485, %v1044, %v849
        %v1057 = vsel %vm485, %v1045, %v851
        %v1058 = vsel %vm485, %v1046, %v853
        %v1059 = vsel %vm485, %v1047, %v855
        %v1060 = vsel %vm494, %v1048, %v869
        %v1061 = vsel %vm494, %v1049, %v871
        %v1062 = vsel %vm494, %v1050, %v873
        %v1063 = vsel %vm494, %v1051, %v875
        %v1064 = vsel %vm494, %v1052, %v877
        %v1065 = vsel %vm494, %v1053, %v879
        %v1066 = vsel %vm494, %v1054, %v881
        %v1067 = vsel %vm494, %v1055, %v883
        %v1068 = vsel %vm494, %v1056, %v885
        %v1069 = vsel %vm494, %v1057, %v887
        %v1070 = vsel %vm494, %v1058, %v889
        %v1071 = vsel %vm494, %v1059, %v891
        %v1072 = vsel %vm503, %v1060, %v905
        %v1073 = vsel %vm503, %v1061, %v907
        %v1074 = vsel %vm503, %v1062, %v909
        %v1075 = vsel %vm503, %v1063, %v911
        %v1076 = vsel %vm503, %v1064, %v913
        %v1077 = vsel %vm503, %v1065, %v915
        %v1078 = vsel %vm503, %v1066, %v917
        %v1079 = vsel %vm503, %v1067, %v919
        %v1080 = vsel %vm503, %v1068, %v921
        %v1081 = vsel %vm503, %v1069, %v923
        %v1082 = vsel %vm503, %v1070, %v925
        %v1083 = vsel %vm503, %v1071, %v927
        %v1084 = vsel %vm512, %v1072, %v941
        %v1085 = vsel %vm512, %v1073, %v943
        %v1086 = vsel %vm512, %v1074, %v945
        %v1087 = vsel %vm512, %v1075, %v947
        %v1088 = vsel %vm512, %v1076, %v949
        %v1089 = vsel %vm512, %v1077, %v951
        %v1090 = vsel %vm512, %v1078, %v953
        %v1091 = vsel %vm512, %v1079, %v955
        %v1092 = vsel %vm512, %v1080, %v957
        %v1093 = vsel %vm512, %v1081, %v959
        %v1094 = vsel %vm512, %v1082, %v961
        %v1095 = vsel %vm512, %v1083, %v963
        %v1096 = vsel %vm458, %v977, 0.0
        %v1097 = vsel %vm458, %v979, 0.0
        %v1098 = vsel %vm458, %v981, 0.0
        %v1099 = vsel %vm458, %v983, 0.0
        %v1100 = vsel %vm458, %v985, 0.0
        %v1101 = vsel %vm458, %v987, 0.0
        %v1102 = vsel %vm458, %v989, 0.0
        %v1103 = vsel %vm458, %v991, 0.0
        %v1104 = vsel %vm458, %v993, 0.0
        %v1105 = vsel %vm458, %v995, 0.0
        %v1106 = vsel %vm458, %v997, 0.0
        %v1107 = vsel %vm458, %v999, 0.0
        %v1108 = vmul.f32 %v513, %v1084
        %v1109 = vmul.f32 %v521, %v1096
        %v1110 = vmul.f32 %v514, %v1085
        %v1111 = vmul.f32 %v522, %v1097
        %v1112 = vmul.f32 %v515, %v1087
        %v1113 = vmul.f32 %v523, %v1099
        %v1114 = vmul.f32 %v516, %v1088
        %v1115 = vmul.f32 %v524, %v1100
        %v1116 = vmul.f32 %v517, %v1090
        %v1117 = vmul.f32 %v525, %v1102
        %v1118 = vmul.f32 %v518, %v1091
        %v1119 = vmul.f32 %v526, %v1103
        %v1120 = vmul.f32 %v519, %v1093
        %v1121 = vmul.f32 %v527, %v1105
        %v1122 = vmul.f32 %v520, %v1094
        %v1123 = vmul.f32 %v528, %v1106
        %v1124 = vld [vmem:[%s223] sm:$0xff]
        %v1125 = vld [vmem:[%s223 + $0x8] sm:$0xff]
        %v1126 = vld [vmem:[%s223 + $0x10] sm:$0xff]
        %v1127 = vld [vmem:[%s223 + $0x18] sm:$0xff]
        %v1128 = vadd.f32 %v1108, %v1112
        %v1129 = vadd.f32 %v1128, %v1116
        %v1130 = vadd.f32 %v1129, %v1120
        %v1131 = vadd.f32 %v1109, %v1113
        %v1132 = vadd.f32 %v1131, %v1117
        %v1133 = vadd.f32 %v1132, %v1121
        %v1134 = vadd.f32 %v1110, %v1114
        %v1135 = vadd.f32 %v1134, %v1118
        %v1136 = vadd.f32 %v1135, %v1122
        %v1137 = vadd.f32 %v1111, %v1115
        %v1138 = vadd.f32 %v1137, %v1119
        %v1139 = vadd.f32 %v1138, %v1123
        %v1140 = vadd.f32 %v1124, %v1130
        %v1141 = vadd.f32 %v1125, %v1133
        %v1142 = vadd.f32 %v1126, %v1136
        %v1143 = vadd.f32 %v1127, %v1139
        %1144 = vst [vmem:[%s223] sm:$0xff] %v1140
        %1145 = vst [vmem:[%s223 + $0x8] sm:$0xff] %v1141
        %1146 = vst [vmem:[%s223 + $0x10] sm:$0xff] %v1142
        %1147 = vst [vmem:[%s223 + $0x18] sm:$0xff] %v1143
        %vm1172 = vcmask 1046528
        %v1173 = vrot.slane %v1084, 1
        %v1174 = vrot.slane %v1085, 1
        %v1175 = vsel %vm1172, %v1173, %v1174
        %v1176 = vrot.slane %v1096, 1
        %v1177 = vrot.slane %v1097, 1
        %v1178 = vsel %vm1172, %v1176, %v1177
        %v1179 = vrot.slane %v1086, 1
        %v1180 = vsel %vm1172, %v1174, %v1179
        %v1181 = vrot.slane %v1098, 1
        %v1182 = vsel %vm1172, %v1177, %v1181
        %v1183 = vrot.slane %v1087, 1
        %v1184 = vrot.slane %v1088, 1
        %v1185 = vsel %vm1172, %v1183, %v1184
        %v1186 = vrot.slane %v1099, 1
        %v1187 = vrot.slane %v1100, 1
        %v1188 = vsel %vm1172, %v1186, %v1187
        %v1189 = vrot.slane %v1089, 1
        %v1190 = vsel %vm1172, %v1184, %v1189
        %v1191 = vrot.slane %v1101, 1
        %v1192 = vsel %vm1172, %v1187, %v1191
        %v1193 = vrot.slane %v1090, 1
        %v1194 = vrot.slane %v1091, 1
        %v1195 = vsel %vm1172, %v1193, %v1194
        %v1196 = vrot.slane %v1102, 1
        %v1197 = vrot.slane %v1103, 1
        %v1198 = vsel %vm1172, %v1196, %v1197
        %v1199 = vrot.slane %v1092, 1
        %v1200 = vsel %vm1172, %v1194, %v1199
        %v1201 = vrot.slane %v1104, 1
        %v1202 = vsel %vm1172, %v1197, %v1201
        %v1203 = vrot.slane %v1093, 1
        %v1204 = vrot.slane %v1094, 1
        %v1205 = vsel %vm1172, %v1203, %v1204
        %v1206 = vrot.slane %v1105, 1
        %v1207 = vrot.slane %v1106, 1
        %v1208 = vsel %vm1172, %v1206, %v1207
        %v1209 = vrot.slane %v1095, 1
        %v1210 = vsel %vm1172, %v1204, %v1209
        %v1211 = vrot.slane %v1107, 1
        %v1212 = vsel %vm1172, %v1207, %v1211
        %v1229 = vmul.f32 %v513, %v1175
        %v1230 = vmul.f32 %v521, %v1178
        %v1231 = vmul.f32 %v514, %v1180
        %v1232 = vmul.f32 %v522, %v1182
        %v1233 = vmul.f32 %v515, %v1185
        %v1234 = vmul.f32 %v523, %v1188
        %v1235 = vmul.f32 %v516, %v1190
        %v1236 = vmul.f32 %v524, %v1192
        %v1237 = vmul.f32 %v517, %v1195
        %v1238 = vmul.f32 %v525, %v1198
        %v1239 = vmul.f32 %v518, %v1200
        %v1240 = vmul.f32 %v526, %v1202
        %v1241 = vmul.f32 %v519, %v1205
        %v1242 = vmul.f32 %v527, %v1208
        %v1243 = vmul.f32 %v520, %v1210
        %v1244 = vmul.f32 %v528, %v1212
        %s1245 = scalar_lea.vmem %s223, 32 [#allocation7]
        %v1246 = vld [vmem:[%s1245] sm:$0xff]
        %v1247 = vld [vmem:[%s1245 + $0x8] sm:$0xff]
        %v1248 = vld [vmem:[%s1245 + $0x10] sm:$0xff]
        %v1249 = vld [vmem:[%s1245 + $0x18] sm:$0xff]
        %v1250 = vadd.f32 %v1229, %v1233
        %v1251 = vadd.f32 %v1250, %v1237
        %v1252 = vadd.f32 %v1251, %v1241
        %v1253 = vadd.f32 %v1230, %v1234
        %v1254 = vadd.f32 %v1253, %v1238
        %v1255 = vadd.f32 %v1254, %v1242
        %v1256 = vadd.f32 %v1231, %v1235
        %v1257 = vadd.f32 %v1256, %v1239
        %v1258 = vadd.f32 %v1257, %v1243
        %v1259 = vadd.f32 %v1232, %v1236
        %v1260 = vadd.f32 %v1259, %v1240
        %v1261 = vadd.f32 %v1260, %v1244
        %v1262 = vadd.f32 %v1246, %v1252
        %v1263 = vadd.f32 %v1247, %v1255
        %v1264 = vadd.f32 %v1248, %v1258
        %v1265 = vadd.f32 %v1249, %v1261
        %1266 = vst [vmem:[%s1245] sm:$0xff] %v1262
        %1267 = vst [vmem:[%s1245 + $0x8] sm:$0xff] %v1263
        %1268 = vst [vmem:[%s1245 + $0x10] sm:$0xff] %v1264
        %1269 = vst [vmem:[%s1245 + $0x18] sm:$0xff] %v1265
        %vm1270 = vcmask 1045504
        %v1271 = vrot.slane %v1084, 2
        %v1272 = vrot.slane %v1085, 2
        %v1273 = vsel %vm1270, %v1271, %v1272
        %v1274 = vrot.slane %v1096, 2
        %v1275 = vrot.slane %v1097, 2
        %v1276 = vsel %vm1270, %v1274, %v1275
        %v1277 = vrot.slane %v1086, 2
        %v1278 = vsel %vm1270, %v1272, %v1277
        %v1279 = vrot.slane %v1098, 2
        %v1280 = vsel %vm1270, %v1275, %v1279
        %v1281 = vrot.slane %v1087, 2
        %v1282 = vrot.slane %v1088, 2
        %v1283 = vsel %vm1270, %v1281, %v1282
        %v1284 = vrot.slane %v1099, 2
        %v1285 = vrot.slane %v1100, 2
        %v1286 = vsel %vm1270, %v1284, %v1285
        %v1287 = vrot.slane %v1089, 2
        %v1288 = vsel %vm1270, %v1282, %v1287
        %v1289 = vrot.slane %v1101, 2
        %v1290 = vsel %vm1270, %v1285, %v1289
        %v1291 = vrot.slane %v1090, 2
        %v1292 = vrot.slane %v1091, 2
        %v1293 = vsel %vm1270, %v1291, %v1292
        %v1294 = vrot.slane %v1102, 2
        %v1295 = vrot.slane %v1103, 2
        %v1296 = vsel %vm1270, %v1294, %v1295
        %v1297 = vrot.slane %v1092, 2
        %v1298 = vsel %vm1270, %v1292, %v1297
        %v1299 = vrot.slane %v1104, 2
        %v1300 = vsel %vm1270, %v1295, %v1299
        %v1301 = vrot.slane %v1093, 2
        %v1302 = vrot.slane %v1094, 2
        %v1303 = vsel %vm1270, %v1301, %v1302
        %v1304 = vrot.slane %v1105, 2
        %v1305 = vrot.slane %v1106, 2
        %v1306 = vsel %vm1270, %v1304, %v1305
        %v1307 = vrot.slane %v1095, 2
        %v1308 = vsel %vm1270, %v1302, %v1307
        %v1309 = vrot.slane %v1107, 2
        %v1310 = vsel %vm1270, %v1305, %v1309
        %v1327 = vmul.f32 %v513, %v1273
        %v1328 = vmul.f32 %v521, %v1276
        %v1329 = vmul.f32 %v514, %v1278
        %v1330 = vmul.f32 %v522, %v1280
        %v1331 = vmul.f32 %v515, %v1283
        %v1332 = vmul.f32 %v523, %v1286
        %v1333 = vmul.f32 %v516, %v1288
        %v1334 = vmul.f32 %v524, %v1290
        %v1335 = vmul.f32 %v517, %v1293
        %v1336 = vmul.f32 %v525, %v1296
        %v1337 = vmul.f32 %v518, %v1298
        %v1338 = vmul.f32 %v526, %v1300
        %v1339 = vmul.f32 %v519, %v1303
        %v1340 = vmul.f32 %v527, %v1306
        %v1341 = vmul.f32 %v520, %v1308
        %v1342 = vmul.f32 %v528, %v1310
        %s1343 = scalar_lea.vmem %s223, 64 [#allocation7]
        %v1344 = vld [vmem:[%s1343] sm:$0xff]
        %v1345 = vld [vmem:[%s1343 + $0x8] sm:$0xff]
        %v1346 = vld [vmem:[%s1343 + $0x10] sm:$0xff]
        %v1347 = vld [vmem:[%s1343 + $0x18] sm:$0xff]
        %v1348 = vadd.f32 %v1327, %v1331
        %v1349 = vadd.f32 %v1348, %v1335
        %v1350 = vadd.f32 %v1349, %v1339
        %v1351 = vadd.f32 %v1328, %v1332
        %v1352 = vadd.f32 %v1351, %v1336
        %v1353 = vadd.f32 %v1352, %v1340
        %v1354 = vadd.f32 %v1329, %v1333
        %v1355 = vadd.f32 %v1354, %v1337
        %v1356 = vadd.f32 %v1355, %v1341
        %v1357 = vadd.f32 %v1330, %v1334
        %v1358 = vadd.f32 %v1357, %v1338
        %v1359 = vadd.f32 %v1358, %v1342
        %v1360 = vadd.f32 %v1344, %v1350
        %v1361 = vadd.f32 %v1345, %v1353
        %v1362 = vadd.f32 %v1346, %v1356
        %v1363 = vadd.f32 %v1347, %v1359
        %1364 = vst [vmem:[%s1343] sm:$0xff] %v1360
        %1365 = vst [vmem:[%s1343 + $0x8] sm:$0xff] %v1361
        %1366 = vst [vmem:[%s1343 + $0x10] sm:$0xff] %v1362
        %1367 = vst [vmem:[%s1343 + $0x18] sm:$0xff] %v1363
        %vm1368 = vcmask 1044480
        %v1369 = vrot.slane %v1084, 3
        %v1370 = vrot.slane %v1085, 3
        %v1371 = vsel %vm1368, %v1369, %v1370
        %v1372 = vrot.slane %v1096, 3
        %v1373 = vrot.slane %v1097, 3
        %v1374 = vsel %vm1368, %v1372, %v1373
        %v1375 = vrot.slane %v1086, 3
        %v1376 = vsel %vm1368, %v1370, %v1375
        %v1377 = vrot.slane %v1098, 3
        %v1378 = vsel %vm1368, %v1373, %v1377
        %v1379 = vrot.slane %v1087, 3
        %v1380 = vrot.slane %v1088, 3
        %v1381 = vsel %vm1368, %v1379, %v1380
        %v1382 = vrot.slane %v1099, 3
        %v1383 = vrot.slane %v1100, 3
        %v1384 = vsel %vm1368, %v1382, %v1383
        %v1385 = vrot.slane %v1089, 3
        %v1386 = vsel %vm1368, %v1380, %v1385
        %v1387 = vrot.slane %v1101, 3
        %v1388 = vsel %vm1368, %v1383, %v1387
        %v1389 = vrot.slane %v1090, 3
        %v1390 = vrot.slane %v1091, 3
        %v1391 = vsel %vm1368, %v1389, %v1390
        %v1392 = vrot.slane %v1102, 3
        %v1393 = vrot.slane %v1103, 3
        %v1394 = vsel %vm1368, %v1392, %v1393
        %v1395 = vrot.slane %v1092, 3
        %v1396 = vsel %vm1368, %v1390, %v1395
        %v1397 = vrot.slane %v1104, 3
        %v1398 = vsel %vm1368, %v1393, %v1397
        %v1399 = vrot.slane %v1093, 3
        %v1400 = vrot.slane %v1094, 3
        %v1401 = vsel %vm1368, %v1399, %v1400
        %v1402 = vrot.slane %v1105, 3
        %v1403 = vrot.slane %v1106, 3
        %v1404 = vsel %vm1368, %v1402, %v1403
        %v1405 = vrot.slane %v1095, 3
        %v1406 = vsel %vm1368, %v1400, %v1405
        %v1407 = vrot.slane %v1107, 3
        %v1408 = vsel %vm1368, %v1403, %v1407
        %v1425 = vmul.f32 %v513, %v1371
        %v1426 = vmul.f32 %v521, %v1374
        %v1427 = vmul.f32 %v514, %v1376
        %v1428 = vmul.f32 %v522, %v1378
        %v1429 = vmul.f32 %v515, %v1381
        %v1430 = vmul.f32 %v523, %v1384
        %v1431 = vmul.f32 %v516, %v1386
        %v1432 = vmul.f32 %v524, %v1388
        %v1433 = vmul.f32 %v517, %v1391
        %v1434 = vmul.f32 %v525, %v1394
        %v1435 = vmul.f32 %v518, %v1396
        %v1436 = vmul.f32 %v526, %v1398
        %v1437 = vmul.f32 %v519, %v1401
        %v1438 = vmul.f32 %v527, %v1404
        %v1439 = vmul.f32 %v520, %v1406
        %v1440 = vmul.f32 %v528, %v1408
        %s1441 = scalar_lea.vmem %s223, 96 [#allocation7]
        %v1442 = vld [vmem:[%s1441] sm:$0xff]
        %v1443 = vld [vmem:[%s1441 + $0x8] sm:$0xff]
        %v1444 = vld [vmem:[%s1441 + $0x10] sm:$0xff]
        %v1445 = vld [vmem:[%s1441 + $0x18] sm:$0xff]
        %v1446 = vadd.f32 %v1425, %v1429
        %v1447 = vadd.f32 %v1446, %v1433
        %v1448 = vadd.f32 %v1447, %v1437
        %v1449 = vadd.f32 %v1426, %v1430
        %v1450 = vadd.f32 %v1449, %v1434
        %v1451 = vadd.f32 %v1450, %v1438
        %v1452 = vadd.f32 %v1427, %v1431
        %v1453 = vadd.f32 %v1452, %v1435
        %v1454 = vadd.f32 %v1453, %v1439
        %v1455 = vadd.f32 %v1428, %v1432
        %v1456 = vadd.f32 %v1455, %v1436
        %v1457 = vadd.f32 %v1456, %v1440
        %v1458 = vadd.f32 %v1442, %v1448
        %v1459 = vadd.f32 %v1443, %v1451
        %v1460 = vadd.f32 %v1444, %v1454
        %v1461 = vadd.f32 %v1445, %v1457
        %1462 = vst [vmem:[%s1441] sm:$0xff] %v1458
        %1463 = vst [vmem:[%s1441 + $0x8] sm:$0xff] %v1459
        %1464 = vst [vmem:[%s1441 + $0x10] sm:$0xff] %v1460
        %1465 = vst [vmem:[%s1441 + $0x18] sm:$0xff] %v1461
        %v1466 = vrot.slane %v1084, 4
        %v1467 = vrot.slane %v1085, 4
        %v1468 = vsel %vm683, %v1466, %v1467
        %v1469 = vrot.slane %v1096, 4
        %v1470 = vrot.slane %v1097, 4
        %v1471 = vsel %vm683, %v1469, %v1470
        %v1472 = vrot.slane %v1086, 4
        %v1473 = vsel %vm683, %v1467, %v1472
        %v1474 = vrot.slane %v1098, 4
        %v1475 = vsel %vm683, %v1470, %v1474
        %v1476 = vrot.slane %v1087, 4
        %v1477 = vrot.slane %v1088, 4
        %v1478 = vsel %vm683, %v1476, %v1477
        %v1479 = vrot.slane %v1099, 4
        %v1480 = vrot.slane %v1100, 4
        %v1481 = vsel %vm683, %v1479, %v1480
        %v1482 = vrot.slane %v1089, 4
        %v1483 = vsel %vm683, %v1477, %v1482
        %v1484 = vrot.slane %v1101, 4
        %v1485 = vsel %vm683, %v1480, %v1484
        %v1486 = vrot.slane %v1090, 4
        %v1487 = vrot.slane %v1091, 4
        %v1488 = vsel %vm683, %v1486, %v1487
        %v1489 = vrot.slane %v1102, 4
        %v1490 = vrot.slane %v1103, 4
        %v1491 = vsel %vm683, %v1489, %v1490
        %v1492 = vrot.slane %v1092, 4
        %v1493 = vsel %vm683, %v1487, %v1492
        %v1494 = vrot.slane %v1104, 4
        %v1495 = vsel %vm683, %v1490, %v1494
        %v1496 = vrot.slane %v1093, 4
        %v1497 = vrot.slane %v1094, 4
        %v1498 = vsel %vm683, %v1496, %v1497
        %v1499 = vrot.slane %v1105, 4
        %v1500 = vrot.slane %v1106, 4
        %v1501 = vsel %vm683, %v1499, %v1500
        %v1502 = vrot.slane %v1095, 4
        %v1503 = vsel %vm683, %v1497, %v1502
        %v1504 = vrot.slane %v1107, 4
        %v1505 = vsel %vm683, %v1500, %v1504
        %v1522 = vmul.f32 %v513, %v1468
        %v1523 = vmul.f32 %v521, %v1471
        %v1524 = vmul.f32 %v514, %v1473
        %v1525 = vmul.f32 %v522, %v1475
        %v1526 = vmul.f32 %v515, %v1478
        %v1527 = vmul.f32 %v523, %v1481
        %v1528 = vmul.f32 %v516, %v1483
        %v1529 = vmul.f32 %v524, %v1485
        %v1530 = vmul.f32 %v517, %v1488
        %v1531 = vmul.f32 %v525, %v1491
        %v1532 = vmul.f32 %v518, %v1493
        %v1533 = vmul.f32 %v526, %v1495
        %v1534 = vmul.f32 %v519, %v1498
        %v1535 = vmul.f32 %v527, %v1501
        %v1536 = vmul.f32 %v520, %v1503
        %v1537 = vmul.f32 %v528, %v1505
        %s1538 = scalar_lea.vmem %s223, 128 [#allocation7]
        %v1539 = vld [vmem:[%s1538] sm:$0xff]
        %v1540 = vld [vmem:[%s1538 + $0x8] sm:$0xff]
        %v1541 = vld [vmem:[%s1538 + $0x10] sm:$0xff]
        %v1542 = vld [vmem:[%s1538 + $0x18] sm:$0xff]
        %v1543 = vadd.f32 %v1522, %v1526
        %v1544 = vadd.f32 %v1543, %v1530
        %v1545 = vadd.f32 %v1544, %v1534
        %v1546 = vadd.f32 %v1523, %v1527
        %v1547 = vadd.f32 %v1546, %v1531
        %v1548 = vadd.f32 %v1547, %v1535
        %v1549 = vadd.f32 %v1524, %v1528
        %v1550 = vadd.f32 %v1549, %v1532
        %v1551 = vadd.f32 %v1550, %v1536
        %v1552 = vadd.f32 %v1525, %v1529
        %v1553 = vadd.f32 %v1552, %v1533
        %v1554 = vadd.f32 %v1553, %v1537
        %v1555 = vadd.f32 %v1539, %v1545
        %v1556 = vadd.f32 %v1540, %v1548
        %v1557 = vadd.f32 %v1541, %v1551
        %v1558 = vadd.f32 %v1542, %v1554
        %1559 = vst [vmem:[%s1538] sm:$0xff] %v1555
        %1560 = vst [vmem:[%s1538 + $0x8] sm:$0xff] %v1556
        %1561 = vst [vmem:[%s1538 + $0x10] sm:$0xff] %v1557
        %1562 = vst [vmem:[%s1538 + $0x18] sm:$0xff] %v1558
        %vm1563 = vcmask 1042432
        %v1564 = vrot.slane %v1084, 5
        %v1565 = vrot.slane %v1085, 5
        %v1566 = vsel %vm1563, %v1564, %v1565
        %v1567 = vrot.slane %v1096, 5
        %v1568 = vrot.slane %v1097, 5
        %v1569 = vsel %vm1563, %v1567, %v1568
        %v1570 = vrot.slane %v1086, 5
        %v1571 = vsel %vm1563, %v1565, %v1570
        %v1572 = vrot.slane %v1098, 5
        %v1573 = vsel %vm1563, %v1568, %v1572
        %v1574 = vrot.slane %v1087, 5
        %v1575 = vrot.slane %v1088, 5
        %v1576 = vsel %vm1563, %v1574, %v1575
        %v1577 = vrot.slane %v1099, 5
        %v1578 = vrot.slane %v1100, 5
        %v1579 = vsel %vm1563, %v1577, %v1578
        %v1580 = vrot.slane %v1089, 5
        %v1581 = vsel %vm1563, %v1575, %v1580
        %v1582 = vrot.slane %v1101, 5
        %v1583 = vsel %vm1563, %v1578, %v1582
        %v1584 = vrot.slane %v1090, 5
        %v1585 = vrot.slane %v1091, 5
        %v1586 = vsel %vm1563, %v1584, %v1585
        %v1587 = vrot.slane %v1102, 5
        %v1588 = vrot.slane %v1103, 5
        %v1589 = vsel %vm1563, %v1587, %v1588
        %v1590 = vrot.slane %v1092, 5
        %v1591 = vsel %vm1563, %v1585, %v1590
        %v1592 = vrot.slane %v1104, 5
        %v1593 = vsel %vm1563, %v1588, %v1592
        %v1594 = vrot.slane %v1093, 5
        %v1595 = vrot.slane %v1094, 5
        %v1596 = vsel %vm1563, %v1594, %v1595
        %v1597 = vrot.slane %v1105, 5
        %v1598 = vrot.slane %v1106, 5
        %v1599 = vsel %vm1563, %v1597, %v1598
        %v1600 = vrot.slane %v1095, 5
        %v1601 = vsel %vm1563, %v1595, %v1600
        %v1602 = vrot.slane %v1107, 5
        %v1603 = vsel %vm1563, %v1598, %v1602
        %v1620 = vmul.f32 %v513, %v1566
        %v1621 = vmul.f32 %v521, %v1569
        %v1622 = vmul.f32 %v514, %v1571
        %v1623 = vmul.f32 %v522, %v1573
        %v1624 = vmul.f32 %v515, %v1576
        %v1625 = vmul.f32 %v523, %v1579
        %v1626 = vmul.f32 %v516, %v1581
        %v1627 = vmul.f32 %v524, %v1583
        %v1628 = vmul.f32 %v517, %v1586
        %v1629 = vmul.f32 %v525, %v1589
        %v1630 = vmul.f32 %v518, %v1591
        %v1631 = vmul.f32 %v526, %v1593
        %v1632 = vmul.f32 %v519, %v1596
        %v1633 = vmul.f32 %v527, %v1599
        %v1634 = vmul.f32 %v520, %v1601
        %v1635 = vmul.f32 %v528, %v1603
        %s1636 = scalar_lea.vmem %s223, 160 [#allocation7]
        %v1637 = vld [vmem:[%s1636] sm:$0xff]
        %v1638 = vld [vmem:[%s1636 + $0x8] sm:$0xff]
        %v1639 = vld [vmem:[%s1636 + $0x10] sm:$0xff]
        %v1640 = vld [vmem:[%s1636 + $0x18] sm:$0xff]
        %v1641 = vadd.f32 %v1620, %v1624
        %v1642 = vadd.f32 %v1641, %v1628
        %v1643 = vadd.f32 %v1642, %v1632
        %v1644 = vadd.f32 %v1621, %v1625
        %v1645 = vadd.f32 %v1644, %v1629
        %v1646 = vadd.f32 %v1645, %v1633
        %v1647 = vadd.f32 %v1622, %v1626
        %v1648 = vadd.f32 %v1647, %v1630
        %v1649 = vadd.f32 %v1648, %v1634
        %v1650 = vadd.f32 %v1623, %v1627
        %v1651 = vadd.f32 %v1650, %v1631
        %v1652 = vadd.f32 %v1651, %v1635
        %v1653 = vadd.f32 %v1637, %v1643
        %v1654 = vadd.f32 %v1638, %v1646
        %v1655 = vadd.f32 %v1639, %v1649
        %v1656 = vadd.f32 %v1640, %v1652
        %1657 = vst [vmem:[%s1636] sm:$0xff] %v1653
        %1658 = vst [vmem:[%s1636 + $0x8] sm:$0xff] %v1654
        %1659 = vst [vmem:[%s1636 + $0x10] sm:$0xff] %v1655
        %1660 = vst [vmem:[%s1636 + $0x18] sm:$0xff] %v1656
        %vm1661 = vcmask 1041408
        %v1662 = vrot.slane %v1084, 6
        %v1663 = vrot.slane %v1085, 6
        %v1664 = vsel %vm1661, %v1662, %v1663
        %v1665 = vrot.slane %v1096, 6
        %v1666 = vrot.slane %v1097, 6
        %v1667 = vsel %vm1661, %v1665, %v1666
        %v1668 = vrot.slane %v1086, 6
        %v1669 = vsel %vm1661, %v1663, %v1668
        %v1670 = vrot.slane %v1098, 6
        %v1671 = vsel %vm1661, %v1666, %v1670
        %v1672 = vrot.slane %v1087, 6
        %v1673 = vrot.slane %v1088, 6
        %v1674 = vsel %vm1661, %v1672, %v1673
        %v1675 = vrot.slane %v1099, 6
        %v1676 = vrot.slane %v1100, 6
        %v1677 = vsel %vm1661, %v1675, %v1676
        %v1678 = vrot.slane %v1089, 6
        %v1679 = vsel %vm1661, %v1673, %v1678
        %v1680 = vrot.slane %v1101, 6
        %v1681 = vsel %vm1661, %v1676, %v1680
        %v1682 = vrot.slane %v1090, 6
        %v1683 = vrot.slane %v1091, 6
        %v1684 = vsel %vm1661, %v1682, %v1683
        %v1685 = vrot.slane %v1102, 6
        %v1686 = vrot.slane %v1103, 6
        %v1687 = vsel %vm1661, %v1685, %v1686
        %v1688 = vrot.slane %v1092, 6
        %v1689 = vsel %vm1661, %v1683, %v1688
        %v1690 = vrot.slane %v1104, 6
        %v1691 = vsel %vm1661, %v1686, %v1690
        %v1692 = vrot.slane %v1093, 6
        %v1693 = vrot.slane %v1094, 6
        %v1694 = vsel %vm1661, %v1692, %v1693
        %v1695 = vrot.slane %v1105, 6
        %v1696 = vrot.slane %v1106, 6
        %v1697 = vsel %vm1661, %v1695, %v1696
        %v1698 = vrot.slane %v1095, 6
        %v1699 = vsel %vm1661, %v1693, %v1698
        %v1700 = vrot.slane %v1107, 6
        %v1701 = vsel %vm1661, %v1696, %v1700
        %v1718 = vmul.f32 %v513, %v1664
        %v1719 = vmul.f32 %v521, %v1667
        %v1720 = vmul.f32 %v514, %v1669
        %v1721 = vmul.f32 %v522, %v1671
        %v1722 = vmul.f32 %v515, %v1674
        %v1723 = vmul.f32 %v523, %v1677
        %v1724 = vmul.f32 %v516, %v1679
        %v1725 = vmul.f32 %v524, %v1681
        %v1726 = vmul.f32 %v517, %v1684
        %v1727 = vmul.f32 %v525, %v1687
        %v1728 = vmul.f32 %v518, %v1689
        %v1729 = vmul.f32 %v526, %v1691
        %v1730 = vmul.f32 %v519, %v1694
        %v1731 = vmul.f32 %v527, %v1697
        %v1732 = vmul.f32 %v520, %v1699
        %v1733 = vmul.f32 %v528, %v1701
        %s1734 = scalar_lea.vmem %s223, 192 [#allocation7]
        %v1735 = vld [vmem:[%s1734] sm:$0xff]
        %v1736 = vld [vmem:[%s1734 + $0x8] sm:$0xff]
        %v1737 = vld [vmem:[%s1734 + $0x10] sm:$0xff]
        %v1738 = vld [vmem:[%s1734 + $0x18] sm:$0xff]
        %v1739 = vadd.f32 %v1718, %v1722
        %v1740 = vadd.f32 %v1739, %v1726
        %v1741 = vadd.f32 %v1740, %v1730
        %v1742 = vadd.f32 %v1719, %v1723
        %v1743 = vadd.f32 %v1742, %v1727
        %v1744 = vadd.f32 %v1743, %v1731
        %v1745 = vadd.f32 %v1720, %v1724
        %v1746 = vadd.f32 %v1745, %v1728
        %v1747 = vadd.f32 %v1746, %v1732
        %v1748 = vadd.f32 %v1721, %v1725
        %v1749 = vadd.f32 %v1748, %v1729
        %v1750 = vadd.f32 %v1749, %v1733
        %v1751 = vadd.f32 %v1735, %v1741
        %v1752 = vadd.f32 %v1736, %v1744
        %v1753 = vadd.f32 %v1737, %v1747
        %v1754 = vadd.f32 %v1738, %v1750
        %1755 = vst [vmem:[%s1734] sm:$0xff] %v1751
        %1756 = vst [vmem:[%s1734 + $0x8] sm:$0xff] %v1752
        %1757 = vst [vmem:[%s1734 + $0x10] sm:$0xff] %v1753
        %1758 = vst [vmem:[%s1734 + $0x18] sm:$0xff] %v1754
        %vm1759 = vcmask 1040384
        %v1760 = vrot.slane %v1084, 7
        %v1761 = vrot.slane %v1085, 7
        %v1762 = vsel %vm1759, %v1760, %v1761
        %v1763 = vrot.slane %v1096, 7
        %v1764 = vrot.slane %v1097, 7
        %v1765 = vsel %vm1759, %v1763, %v1764
        %v1766 = vrot.slane %v1086, 7
        %v1767 = vsel %vm1759, %v1761, %v1766
        %v1768 = vrot.slane %v1098, 7
        %v1769 = vsel %vm1759, %v1764, %v1768
        %v1770 = vrot.slane %v1087, 7
        %v1771 = vrot.slane %v1088, 7
        %v1772 = vsel %vm1759, %v1770, %v1771
        %v1773 = vrot.slane %v1099, 7
        %v1774 = vrot.slane %v1100, 7
        %v1775 = vsel %vm1759, %v1773, %v1774
        %v1776 = vrot.slane %v1089, 7
        %v1777 = vsel %vm1759, %v1771, %v1776
        %v1778 = vrot.slane %v1101, 7
        %v1779 = vsel %vm1759, %v1774, %v1778
        %v1780 = vrot.slane %v1090, 7
        %v1781 = vrot.slane %v1091, 7
        %v1782 = vsel %vm1759, %v1780, %v1781
        %v1783 = vrot.slane %v1102, 7
        %v1784 = vrot.slane %v1103, 7
        %v1785 = vsel %vm1759, %v1783, %v1784
        %v1786 = vrot.slane %v1092, 7
        %v1787 = vsel %vm1759, %v1781, %v1786
        %v1788 = vrot.slane %v1104, 7
        %v1789 = vsel %vm1759, %v1784, %v1788
        %v1790 = vrot.slane %v1093, 7
        %v1791 = vrot.slane %v1094, 7
        %v1792 = vsel %vm1759, %v1790, %v1791
        %v1793 = vrot.slane %v1105, 7
        %v1794 = vrot.slane %v1106, 7
        %v1795 = vsel %vm1759, %v1793, %v1794
        %v1796 = vrot.slane %v1095, 7
        %v1797 = vsel %vm1759, %v1791, %v1796
        %v1798 = vrot.slane %v1107, 7
        %v1799 = vsel %vm1759, %v1794, %v1798
        %v1816 = vmul.f32 %v513, %v1762
        %v1817 = vmul.f32 %v521, %v1765
        %v1818 = vmul.f32 %v514, %v1767
        %v1819 = vmul.f32 %v522, %v1769
        %v1820 = vmul.f32 %v515, %v1772
        %v1821 = vmul.f32 %v523, %v1775
        %v1822 = vmul.f32 %v516, %v1777
        %v1823 = vmul.f32 %v524, %v1779
        %v1824 = vmul.f32 %v517, %v1782
        %v1825 = vmul.f32 %v525, %v1785
        %v1826 = vmul.f32 %v518, %v1787
        %v1827 = vmul.f32 %v526, %v1789
        %v1828 = vmul.f32 %v519, %v1792
        %v1829 = vmul.f32 %v527, %v1795
        %v1830 = vmul.f32 %v520, %v1797
        %v1831 = vmul.f32 %v528, %v1799
        %s1832 = scalar_lea.vmem %s223, 224 [#allocation7]
        %v1833 = vld [vmem:[%s1832] sm:$0xff]
        %v1834 = vld [vmem:[%s1832 + $0x8] sm:$0xff]
        %v1835 = vld [vmem:[%s1832 + $0x10] sm:$0xff]
        %v1836 = vld [vmem:[%s1832 + $0x18] sm:$0xff]
        %v1837 = vadd.f32 %v1816, %v1820
        %v1838 = vadd.f32 %v1837, %v1824
        %v1839 = vadd.f32 %v1838, %v1828
        %v1840 = vadd.f32 %v1817, %v1821
        %v1841 = vadd.f32 %v1840, %v1825
        %v1842 = vadd.f32 %v1841, %v1829
        %v1843 = vadd.f32 %v1818, %v1822
        %v1844 = vadd.f32 %v1843, %v1826
        %v1845 = vadd.f32 %v1844, %v1830
        %v1846 = vadd.f32 %v1819, %v1823
        %v1847 = vadd.f32 %v1846, %v1827
        %v1848 = vadd.f32 %v1847, %v1831
        %v1849 = vadd.f32 %v1833, %v1839
        %v1850 = vadd.f32 %v1834, %v1842
        %v1851 = vadd.f32 %v1835, %v1845
        %v1852 = vadd.f32 %v1836, %v1848
        %1853 = vst [vmem:[%s1832] sm:$0xff] %v1849
        %1854 = vst [vmem:[%s1832 + $0x8] sm:$0xff] %v1850
        %1855 = vst [vmem:[%s1832 + $0x10] sm:$0xff] %v1851
        %1856 = vst [vmem:[%s1832 + $0x18] sm:$0xff] %v1852
        %v1857 = vmul.f32 %v513, %v1085
        %v1858 = vmul.f32 %v521, %v1097
        %v1859 = vmul.f32 %v514, %v1086
        %v1860 = vmul.f32 %v522, %v1098
        %v1861 = vmul.f32 %v515, %v1088
        %v1862 = vmul.f32 %v523, %v1100
        %v1863 = vmul.f32 %v516, %v1089
        %v1864 = vmul.f32 %v524, %v1101
        %v1865 = vmul.f32 %v517, %v1091
        %v1866 = vmul.f32 %v525, %v1103
        %v1867 = vmul.f32 %v518, %v1092
        %v1868 = vmul.f32 %v526, %v1104
        %v1869 = vmul.f32 %v519, %v1094
        %v1870 = vmul.f32 %v527, %v1106
        %v1871 = vmul.f32 %v520, %v1095
        %v1872 = vmul.f32 %v528, %v1107
        %s1873 = scalar_lea.vmem %s223, 256 [#allocation7]
        %v1874 = vld [vmem:[%s1873] sm:$0xff]
        %v1875 = vld [vmem:[%s1873 + $0x8] sm:$0xff]
        %v1876 = vld [vmem:[%s1873 + $0x10] sm:$0xff]
        %v1877 = vld [vmem:[%s1873 + $0x18] sm:$0xff]
        %v1878 = vadd.f32 %v1857, %v1861
        %v1879 = vadd.f32 %v1878, %v1865
        %v1880 = vadd.f32 %v1879, %v1869
        %v1881 = vadd.f32 %v1858, %v1862
        %v1882 = vadd.f32 %v1881, %v1866
        %v1883 = vadd.f32 %v1882, %v1870
        %v1884 = vadd.f32 %v1859, %v1863
        %v1885 = vadd.f32 %v1884, %v1867
        %v1886 = vadd.f32 %v1885, %v1871
        %v1887 = vadd.f32 %v1860, %v1864
        %v1888 = vadd.f32 %v1887, %v1868
        %v1889 = vadd.f32 %v1888, %v1872
        %v1890 = vadd.f32 %v1874, %v1880
        %v1891 = vadd.f32 %v1875, %v1883
        %v1892 = vadd.f32 %v1876, %v1886
        %v1893 = vadd.f32 %v1877, %v1889
        %1894 = vst [vmem:[%s1873] sm:$0xff] %v1890
        %1895 = vst [vmem:[%s1873 + $0x8] sm:$0xff] %v1891
        %1896 = vst [vmem:[%s1873 + $0x10] sm:$0xff] %v1892
        %1897 = vst [vmem:[%s1873 + $0x18] sm:$0xff] %v1893
        %p1898 = scmp.eq.s32.totalorder %s27, 1
        // Predicated region
        $region41: #{tpu_custom_call.1} parent=27 // pred_check
          %p1899 = pneg %p1898
        $region42: #{tpu_custom_call.1} parent=27 // pred_check_branch
          %1901 = sbr.rel (%p1899) target = $region44
        $region43: #{tpu_custom_call.1} parent=27 // pred_region
          %v1902 = vld [vmem:[%s223] sm:$0xff]
          %v1903 = vld [vmem:[%s223 + $0x8] sm:$0xff]
          %v1904 = vld [vmem:[%s223 + $0x10] sm:$0xff]
          %v1905 = vld [vmem:[%s223 + $0x18] sm:$0xff]
          %v1906 = vld [vmem:[%s223 + $0x20] sm:$0xff]
          %v1907 = vld [vmem:[%s223 + $0x28] sm:$0xff]
          %v1908 = vld [vmem:[%s223 + $0x30] sm:$0xff]
          %v1909 = vld [vmem:[%s223 + $0x38] sm:$0xff]
          %v1910 = vld [vmem:[%s223 + $0x40] sm:$0xff]
          %v1911 = vld [vmem:[%s223 + $0x48] sm:$0xff]
          %v1912 = vld [vmem:[%s223 + $0x50] sm:$0xff]
          %v1913 = vld [vmem:[%s223 + $0x58] sm:$0xff]
          %v1914 = vld [vmem:[%s223 + $0x60] sm:$0xff]
          %v1915 = vld [vmem:[%s223 + $0x68] sm:$0xff]
          %v1916 = vld [vmem:[%s223 + $0x70] sm:$0xff]
          %v1917 = vld [vmem:[%s223 + $0x78] sm:$0xff]
          %v1918 = vld [vmem:[%s223 + $0x80] sm:$0xff]
          %v1919 = vld [vmem:[%s223 + $0x88] sm:$0xff]
          %v1920 = vld [vmem:[%s223 + $0x90] sm:$0xff]
          %v1921 = vld [vmem:[%s223 + $0x98] sm:$0xff]
          %v1922 = vld [vmem:[%s223 + $0xa0] sm:$0xff]
          %v1923 = vld [vmem:[%s223 + $0xa8] sm:$0xff]
          %v1924 = vld [vmem:[%s223 + $0xb0] sm:$0xff]
          %v1925 = vld [vmem:[%s223 + $0xb8] sm:$0xff]
          %v1926 = vld [vmem:[%s223 + $0xc0] sm:$0xff]
          %v1927 = vld [vmem:[%s223 + $0xc8] sm:$0xff]
          %v1928 = vld [vmem:[%s223 + $0xd0] sm:$0xff]
          %v1929 = vld [vmem:[%s223 + $0xd8] sm:$0xff]
          %v1930 = vld [vmem:[%s223 + $0xe0] sm:$0xff]
          %v1931 = vld [vmem:[%s223 + $0xe8] sm:$0xff]
          %v1932 = vld [vmem:[%s223 + $0xf0] sm:$0xff]
          %v1933 = vld [vmem:[%s223 + $0xf8] sm:$0xff]
          %v1934 = vld [vmem:[%s223 + $0x100] sm:$0xff]
          %v1935 = vld [vmem:[%s223 + $0x108] sm:$0xff]
          %v1936 = vld [vmem:[%s223 + $0x110] sm:$0xff]
          %v1937 = vld [vmem:[%s223 + $0x118] sm:$0xff]
          %v1938 = vmul.f32 %v1902, 0.5
          %v1939 = vmul.f32 %v1903, 0.5
          %v1940 = vmul.f32 %v1904, 0.5
          %v1941 = vmul.f32 %v1905, 0.5
          %v1942 = vmul.f32 %v1906, 0.5
          %v1943 = vmul.f32 %v1907, 0.5
          %v1944 = vmul.f32 %v1908, 0.5
          %v1945 = vmul.f32 %v1909, 0.5
          %v1946 = vmul.f32 %v1910, 0.5
          %v1947 = vmul.f32 %v1911, 0.5
          %v1948 = vmul.f32 %v1912, 0.5
          %v1949 = vmul.f32 %v1913, 0.5
          %v1950 = vmul.f32 %v1914, 0.5
          %v1951 = vmul.f32 %v1915, 0.5
          %v1952 = vmul.f32 %v1916, 0.5
          %v1953 = vmul.f32 %v1917, 0.5
          %v1954 = vmul.f32 %v1918, 0.5
          %v1955 = vmul.f32 %v1919, 0.5
          %v1956 = vmul.f32 %v1920, 0.5
          %v1957 = vmul.f32 %v1921, 0.5
          %v1958 = vmul.f32 %v1922, 0.5
          %v1959 = vmul.f32 %v1923, 0.5
          %v1960 = vmul.f32 %v1924, 0.5
          %v1961 = vmul.f32 %v1925, 0.5
          %v1962 = vmul.f32 %v1926, 0.5
          %v1963 = vmul.f32 %v1927, 0.5
          %v1964 = vmul.f32 %v1928, 0.5
          %v1965 = vmul.f32 %v1929, 0.5
          %v1966 = vmul.f32 %v1930, 0.5
          %v1967 = vmul.f32 %v1931, 0.5
          %v1968 = vmul.f32 %v1932, 0.5
          %v1969 = vmul.f32 %v1933, 0.5
          %v1970 = vmul.f32 %v1934, 0.5
          %v1971 = vmul.f32 %v1935, 0.5
          %v1972 = vmul.f32 %v1936, 0.5
          %v1973 = vmul.f32 %v1937, 0.5
          %1974 = vst [vmem:[%s223] sm:$0xff] %v1938
          %1975 = vst [vmem:[%s223 + $0x8] sm:$0xff] %v1939
          %1976 = vst [vmem:[%s223 + $0x10] sm:$0xff] %v1940
          %1977 = vst [vmem:[%s223 + $0x18] sm:$0xff] %v1941
          %1978 = vst [vmem:[%s223 + $0x20] sm:$0xff] %v1942
          %1979 = vst [vmem:[%s223 + $0x28] sm:$0xff] %v1943
          %1980 = vst [vmem:[%s223 + $0x30] sm:$0xff] %v1944
          %1981 = vst [vmem:[%s223 + $0x38] sm:$0xff] %v1945
          %1982 = vst [vmem:[%s223 + $0x40] sm:$0xff] %v1946
          %1983 = vst [vmem:[%s223 + $0x48] sm:$0xff] %v1947
          %1984 = vst [vmem:[%s223 + $0x50] sm:$0xff] %v1948
          %1985 = vst [vmem:[%s223 + $0x58] sm:$0xff] %v1949
          %1986 = vst [vmem:[%s223 + $0x60] sm:$0xff] %v1950
          %1987 = vst [vmem:[%s223 + $0x68] sm:$0xff] %v1951
          %1988 = vst [vmem:[%s223 + $0x70] sm:$0xff] %v1952
          %1989 = vst [vmem:[%s223 + $0x78] sm:$0xff] %v1953
          %1990 = vst [vmem:[%s223 + $0x80] sm:$0xff] %v1954
          %1991 = vst [vmem:[%s223 + $0x88] sm:$0xff] %v1955
          %1992 = vst [vmem:[%s223 + $0x90] sm:$0xff] %v1956
          %1993 = vst [vmem:[%s223 + $0x98] sm:$0xff] %v1957
          %1994 = vst [vmem:[%s223 + $0xa0] sm:$0xff] %v1958
          %1995 = vst [vmem:[%s223 + $0xa8] sm:$0xff] %v1959
          %1996 = vst [vmem:[%s223 + $0xb0] sm:$0xff] %v1960
          %1997 = vst [vmem:[%s223 + $0xb8] sm:$0xff] %v1961
          %1998 = vst [vmem:[%s223 + $0xc0] sm:$0xff] %v1962
          %1999 = vst [vmem:[%s223 + $0xc8] sm:$0xff] %v1963
          %2000 = vst [vmem:[%s223 + $0xd0] sm:$0xff] %v1964
          %2001 = vst [vmem:[%s223 + $0xd8] sm:$0xff] %v1965
          %2002 = vst [vmem:[%s223 + $0xe0] sm:$0xff] %v1966
          %2003 = vst [vmem:[%s223 + $0xe8] sm:$0xff] %v1967
          %2004 = vst [vmem:[%s223 + $0xf0] sm:$0xff] %v1968
          %2005 = vst [vmem:[%s223 + $0xf8] sm:$0xff] %v1969
          %2006 = vst [vmem:[%s223 + $0x100] sm:$0xff] %v1970
          %2007 = vst [vmem:[%s223 + $0x108] sm:$0xff] %v1971
          %2008 = vst [vmem:[%s223 + $0x110] sm:$0xff] %v1972
          %2009 = vst [vmem:[%s223 + $0x118] sm:$0xff] %v1973
        $region44: #{tpu_custom_call.1} parent=27 // pred_fallthru
          _
        %s2010 = sand.u32 %s98, 1
        %s2011 = scalar_lea.sflag [#allocation4], %s2010
        %s2012 = sand.u32 %s98, 1
        %s2013 = smul.addr %s2012, 288
        %s2014 = scalar_lea.vmem [#allocation7], %s2013
        // Predicated region
        $region45: #{tpu_custom_call.1} parent=27 // pred_check
          %p2015 = pneg %p108
        $region46: #{tpu_custom_call.1} parent=27 // pred_check_branch
          %2017 = sbr.rel (%p2015) target = $region48
        $region47: #{tpu_custom_call.1} parent=27 // pred_region
          %s2019 = ssub.s32 4608, 4608
          %2020 = vsyncadd %s2011, %s2019
          %s2021 = smul.addr %s26, 36
          %s2022 = smul.addr %s2021, 128
          %s2023 = scalar_lea.hbm %s2, %s2022
          %s2024 = sshll.u32 %s2014, 4
          %s2025 = int_to_ptr.vmem [resolvable:$true] %s2024
          %2030 = dma.vmem_to_hbm [thread:$0]  %s2025, 4608, %s2023, %s2011, 256, 256, 16
        $region48: #{tpu_custom_call.1} parent=27 // pred_fallthru
          _
      $region28: #{tpu_custom_call.1} parent=5 // pred_fallthru
        _
      %p2031 = scmp.le.s32.totalorder 2, %s17
      // Predicated region
      $region49: #{tpu_custom_call.1} parent=5 // pred_check
        %p2032 = pneg %p2031
      $region50: #{tpu_custom_call.1} parent=5 // pred_check_branch
        %2034 = sbr.rel (%p2032) target = $region52
      $region51: #{tpu_custom_call.1} parent=5 // pred_region
        %s2035 = ssub.s32 %s17, 2
        // Predicated region
        $region53: #{tpu_custom_call.1} parent=51 // pred_check
          %p2036 = pneg %p114
        $region54: #{tpu_custom_call.1} parent=51 // pred_check_branch
          %2038 = sbr.rel (%p2036) target = $region56
        $region55: #{tpu_custom_call.1} parent=51 // pred_region
          %s2039 = sand.u32 %s99, 1
          %s2040 = scalar_lea.sflag [#allocation4], %s2039
          %s2041 = sand.u32 %s99, 1
          %s2042 = smul.addr %s2041, 288
          %s2043 = scalar_lea.vmem [#allocation7], %s2042
          %2044 = dma.done %s2040, 4608
        $region56: #{tpu_custom_call.1} parent=51 // pred_fallthru
          _
      $region52: #{tpu_custom_call.1} parent=5 // pred_fallthru
        _
    $region6: #{tpu_custom_call.1} parent=1 // loop_footer
      %s21 = sadd.s32 1, %s17
    $region7: #{tpu_custom_call.1} parent=1 // loop_footer_branch
      %16 = sbr.rel target = $region3
    $region8: #{tpu_custom_call.1} parent=1 // loop_exit
      _
    %2045 = vsyncpa [#allocation3], 1
    %s2046 = scalar_lea.sflag [#allocation3], 1
    %2047 = vsyncpa %s2046, 1
    %2048 = vsyncpa [#allocation6], 1
    %s2049 = scalar_lea.sflag [#allocation6], 1
    %2050 = vsyncpa %s2049, 1
    %2051 = vsyncpa [#allocation4], 1
    %s2052 = scalar_lea.sflag [#allocation4], 1
    %2053 = vsyncpa %s2052, 1

</llo_original>
